<compile_context>
chip_gen: v7x
topology: tpu7x:2x2x1
jax: 0.10.0
libtpu: 0.0.40
codegen_flags: <defaults>
</compile_context>

<pallas_src>
import functools

import jax
import jax.numpy as jnp
from jax import lax
from jax.experimental import pallas as pl
from jax.experimental.pallas import tpu as pltpu


def _round_up(x, m):
    return ((x + m - 1) // m) * m


# ---------------------------------------------------------------------------
# Kernel 1: strictly-sequential 2-layer LSTM recurrence.
# Grid: one iteration per chunk of T time steps ("arbitrary" -> sequential).
# (h, c) for both layers live in a single VMEM scratch persisting across the
# grid; the top-layer hidden state h2 is emitted per step for the (hoisted)
# vocab projection.
# ---------------------------------------------------------------------------
def _lstm_recurrent_kernel(x_ref,            # (T, Bp, E)   embeddings chunk
                           w1_ref, b1_ref,   # (E+H, 4H), (1, 4H)
                           w2_ref, b2_ref,   # (2H, 4H),  (1, 4H)
                           h2_ref,           # (T, Bp, H)   per-step top hidden
                           hn_ref, cn_ref,   # (2, Bp, H)   final states
                           state,            # VMEM scratch (4, Bp, H)
                           *, seq_len, masked_tail):
    T = x_ref.shape[0]
    H = hn_ref.shape[-1]
    chunk = pl.program_id(0)
    n_chunks = pl.num_programs(0)

    # hidden=None in the reference module -> zero initial state.
    @pl.when(chunk == 0)
    def _():
        state[...] = jnp.zeros_like(state)

    w1 = w1_ref[...]
    b1 = b1_ref[...]
    w2 = w2_ref[...]
    b2 = b2_ref[...]

    def cell(xh, c, w, b):
        # PyTorch LSTM gate order: i, f, g, o.  One fused matmul, K = E + H.
        g = jnp.dot(xh, w, preferred_element_type=jnp.float32) + b
        i = jax.nn.sigmoid(g[:, 0 * H:1 * H])
        f = jax.nn.sigmoid(g[:, 1 * H:2 * H])
        gg = jnp.tanh(g[:, 2 * H:3 * H])
        o = jax.nn.sigmoid(g[:, 3 * H:4 * H])
        c_new = f * c + i * gg
        h_new = o * jnp.tanh(c_new)
        return h_new, c_new

    def step(i, carry):
        h1, c1, h2, c2 = carry
        x_t = x_ref[i]                                             # (Bp, E)
        h1n, c1n = cell(jnp.concatenate([x_t, h1], axis=-1), c1, w1, b1)
        h2n, c2n = cell(jnp.concatenate([h1n, h2], axis=-1), c2, w2, b2)
        h2_ref[i] = h2n.astype(h2_ref.dtype)
        if masked_tail:
            # Only when seq_len is not a multiple of the chunk size: freeze the
            # carried state on padded steps so h_n / c_n stay correct.
            keep = (chunk * T + i) < seq_len
            h1n = jnp.where(keep, h1n, h1)
            c1n = jnp.where(keep, c1n, c1)
            h2n = jnp.where(keep, h2n, h2)
            c2n = jnp.where(keep, c2n, c2)
        return (h1n, c1n, h2n, c2n)

    carry = (state[0], state[1], state[2], state[3])
    h1, c1, h2, c2 = lax.fori_loop(0, T, step, carry, unroll=True)
    state[0] = h1
    state[1] = c1
    state[2] = h2
    state[3] = c2

    # h_n / c_n are resident output blocks: write them exactly once.
    @pl.when(chunk == n_chunks - 1)
    def _():
        hn_ref[0] = h1
        hn_ref[1] = h2
        cn_ref[0] = c1
        cn_ref[1] = c2


# ---------------------------------------------------------------------------
# Kernel 2: hoisted vocab projection  logits = h2 @ W_out + b_out.
# Fully parallel tiled matmul (no sequential dependence); bf16 operands feed
# the MXU, f32 accumulate, lane-dense (padded-V) output tiles.
# ---------------------------------------------------------------------------
def _proj_kernel(h_ref, w_ref, b_ref, o_ref):
    acc = jnp.dot(h_ref[...].astype(w_ref.dtype), w_ref[...],
                  preferred_element_type=jnp.float32)
    o_ref[...] = (acc + b_ref[...]).astype(o_ref.dtype)


def lstm_lm_forward(token_ids, params, *, t_chunk=16):
    """token_ids: (seq_len, batch) int32.  Returns (logits, (h_n, c_n))."""
    S, B = token_ids.shape
    emb = params["embedding"]                          # (V, E)
    V, E = emb.shape
    H = params["w_hh1_t"].shape[0]

    # ---- TPU-friendly padding -------------------------------------------
    Bp = _round_up(B, 8)                  # f32 sublane count
    T = min(t_chunk, S)                   # time steps per grid iteration
    Sp = _round_up(S, T)
    Vp = _round_up(V, 128)                # lane-dense logits store
    masked_tail = (Sp != S)

    # Embedding gather (data-dependent row gather) stays in plain JAX.
    embeds = jnp.take(emb, token_ids, axis=0)                      # (S, B, E)
    embeds = jnp.pad(embeds, ((0, Sp - S), (0, Bp - B), (0, 0)))   # (Sp, Bp, E)

    # Fused gate weights: concat([x, h], -1) @ concat([w_ih; w_hh], 0).
    w1 = jnp.concatenate([params["w_ih1_t"], params["w_hh1_t"]], axis=0)
    w2 = jnp.concatenate([params["w_ih2_t"], params["w_hh2_t"]], axis=0)
    b1, b2 = params["b1"], params["b2"]

    n_chunks = Sp // T
    full = lambda shape: pl.BlockSpec(shape, lambda t: tuple(0 for _ in shape))

    grid_spec = pltpu.PrefetchScalarGridSpec(
        num_scalar_prefetch=0,
        grid=(n_chunks,),
        in_specs=[
            pl.BlockSpec((T, Bp, E), lambda t: (t, 0, 0)),   # embeddings chunk
            full((E + H, 4 * H)), full((1, 4 * H)),          # layer 1 weights
            full((2 * H, 4 * H)), full((1, 4 * H)),          # layer 2 weights
        ],
        out_specs=[
            pl.BlockSpec((T, Bp, H), lambda t: (t, 0, 0)),   # per-step h2
            pl.BlockSpec((2, Bp, H), lambda t: (0, 0, 0)),   # h_n (resident)
            pl.BlockSpec((2, Bp, H), lambda t: (0, 0, 0)),   # c_n (resident)
        ],
        scratch_shapes=[pltpu.VMEM((4, Bp, H), jnp.float32)],
    )

    h2_seq, h_n, c_n = pl.pallas_call(
        functools.partial(_lstm_recurrent_kernel,
                          seq_len=S, masked_tail=masked_tail),
        out_shape=(
            jax.ShapeDtypeStruct((Sp, Bp, H), jnp.float32),
            jax.ShapeDtypeStruct((2, Bp, H), jnp.float32),
            jax.ShapeDtypeStruct((2, Bp, H), jnp.float32),
        ),
        grid_spec=grid_spec,
        compiler_params=pltpu.CompilerParams(
            dimension_semantics=("arbitrary",)),   # time is sequential
    )(embeds, w1, b1, w2, b2)

    # ---- hoisted vocab projection (parallel tiled matmul) ----------------
    M = Sp * Bp
    h2_flat = h2_seq.reshape(M, H)
    w_out = jnp.pad(params["w_out_t"], ((0, 0), (0, Vp - V))).astype(jnp.bfloat16)
    b_out = jnp.pad(params["b_out"], ((0, 0), (0, Vp - V)))

    TM = 128 if (M % 128 == 0) else M          # M is always a multiple of 8
    if Vp % 512 == 0:
        TN = 512
    elif Vp % 256 == 0:
        TN = 256
    else:
        TN = 128                               # Vp is a multiple of 128

    logits_flat = pl.pallas_call(
        _proj_kernel,
        out_shape=jax.ShapeDtypeStruct((M, Vp), jnp.float32),
        grid_spec=pltpu.PrefetchScalarGridSpec(
            num_scalar_prefetch=0,
            grid=(M // TM, Vp // TN),
            in_specs=[
                pl.BlockSpec((TM, H), lambda i, j: (i, 0)),
                pl.BlockSpec((H, TN), lambda i, j: (0, j)),
                pl.BlockSpec((1, TN), lambda i, j: (0, j)),
            ],
            out_specs=pl.BlockSpec((TM, TN), lambda i, j: (i, j)),
        ),
        compiler_params=pltpu.CompilerParams(
            dimension_semantics=("parallel", "parallel")),  # megacore-friendly
    )(h2_flat, w_out, b_out)

    logits = logits_flat.reshape(Sp, Bp, Vp)[:S, :B, :V]
    return logits, (h_n[:, :B, :], c_n[:, :B, :])


# ---------------------------------------------------------------------------
# Pure-JAX reference (identical semantics) for verification.
# ---------------------------------------------------------------------------
def _lstm_cell_ref(x, h, c, w_ih_t, w_hh_t, b):
    H = h.shape[-1]
    gates = (jnp.dot(x, w_ih_t, preferred_element_type=jnp.float32)
             + jnp.dot(h, w_hh_t, preferred_element_type=jnp.float32) + b)
    i = jax.nn.sigmoid(gates[:, 0 * H:1 * H])
    f = jax.nn.sigmoid(gates[:, 1 * H:2 * H])
    g = jnp.tanh(gates[:, 2 * H:3 * H])
    o = jax.nn.sigmoid(gates[:, 3 * H:4 * H])
    c_new = f * c + i * g
    h_new = o * jnp.tanh(c_new)
    return h_new, c_new


def reference_forward(token_ids, params):
    H = params["w_hh1_t"].shape[0]
    S, B = token_ids.shape
    embeds = jnp.take(params["embedding"], token_ids, axis=0)

    def step(carry, x_t):
        h1, c1, h2, c2 = carry
        h1, c1 = _lstm_cell_ref(x_t, h1, c1, params["w_ih1_t"],
                                params["w_hh1_t"], params["b1"])
        h2, c2 = _lstm_cell_ref(h1, h2, c2, params["w_ih2_t"],
                                params["w_hh2_t"], params["b2"])
        logit = jnp.dot(h2, params["w_out_t"]) + params["b_out"]
        return (h1, c1, h2, c2), logit

    zeros = jnp.zeros((B, H), jnp.float32)
    (h1, c1, h2, c2), logits = lax.scan(step, (zeros,) * 4, embeds)
    return logits, (jnp.stack([h1, h2]), jnp.stack([c1, c2]))


def init_params(key, vocab_size, embedding_dim, hidden_dim):
    ks = jax.random.split(key, 9)
    H, E, V = hidden_dim, embedding_dim, vocab_size
    s = 0.1
    return {
        # stored transposed so the kernels can do x @ W directly;
        # the single bias per layer corresponds to PyTorch's b_ih + b_hh.
        "embedding": jax.random.normal(ks[0], (V, E), jnp.float32) * s,
        "w_ih1_t": jax.random.normal(ks[1], (E, 4 * H), jnp.float32) * s,
        "w_hh1_t": jax.random.normal(ks[2], (H, 4 * H), jnp.float32) * s,
        "b1":      jax.random.normal(ks[3], (1, 4 * H), jnp.float32) * s,
        "w_ih2_t": jax.random.normal(ks[4], (H, 4 * H), jnp.float32) * s,
        "w_hh2_t": jax.random.normal(ks[5], (H, 4 * H), jnp.float32) * s,
        "b2":      jax.random.normal(ks[6], (1, 4 * H), jnp.float32) * s,
        "w_out_t": jax.random.normal(ks[7], (H, V), jnp.float32) * s,
        "b_out":   jax.random.normal(ks[8], (1, V), jnp.float32) * s,
    }


if __name__ == "__main__":
    VOCAB, EMB, HID = 50, 16, 32
    SEQ, BATCH = 8, 2

    key = jax.random.PRNGKey(0)
    k_params, k_tokens = jax.random.split(key)
    params = init_params(k_params, VOCAB, EMB, HID)
    token_ids = jax.random.randint(k_tokens, (SEQ, BATCH), 0, VOCAB, jnp.int32)

    logits, (h_n, c_n) = lstm_lm_forward(token_ids, params)
    jax.block_until_ready((logits, h_n, c_n))

    ref_logits, (ref_h, ref_c) = reference_forward(token_ids, params)
    assert logits.shape == (SEQ, BATCH, VOCAB)
    assert h_n.shape == (2, BATCH, HID) and c_n.shape == (2, BATCH, HID)
    assert jnp.allclose(logits, ref_logits, atol=5e-2, rtol=5e-2)
    assert jnp.allclose(h_n, ref_h, atol=5e-2, rtol=5e-2)
    assert jnp.allclose(c_n, ref_c, atol=5e-2, rtol=5e-2)

    print("KERNEL_OK")
</pallas_src>

<mosaic_0001>
module attributes {stable_mosaic.version = 11 : i64} {
  func.func @_lstm_recurrent_kernel(%arg0: i32, %arg1: memref<8x8x16xf32, #tpu.memory_space<vmem>>, %arg2: memref<48x128xf32, #tpu.memory_space<vmem>>, %arg3: memref<1x128xf32, #tpu.memory_space<vmem>>, %arg4: memref<64x128xf32, #tpu.memory_space<vmem>>, %arg5: memref<1x128xf32, #tpu.memory_space<vmem>>, %arg6: memref<8x8x32xf32, #tpu.memory_space<vmem>>, %arg7: memref<2x8x32xf32, #tpu.memory_space<vmem>>, %arg8: memref<2x8x32xf32, #tpu.memory_space<vmem>>, %arg9: memref<4x8x32xf32, #tpu.memory_space<vmem>>) attributes {dimension_semantics = [#tpu.dimension_semantics<arbitrary>], iteration_bounds = array<i64: 1>, scalar_prefetch = 0 : i64, scratch_operands = 1 : i64, tpu.core_type = #tpu.core_type<tc>, window_params = [{transform_indices = @transform_0, window_bounds = array<i64: 8, 8, 16>}, {pipeline_mode = #tpu.pipeline_mode<synchronous>, transform_indices = @transform_1, window_bounds = array<i64: 48, 128>}, {pipeline_mode = #tpu.pipeline_mode<synchronous>, transform_indices = @transform_2, window_bounds = array<i64: 1, 128>}, {pipeline_mode = #tpu.pipeline_mode<synchronous>, transform_indices = @transform_3, window_bounds = array<i64: 64, 128>}, {pipeline_mode = #tpu.pipeline_mode<synchronous>, transform_indices = @transform_4, window_bounds = array<i64: 1, 128>}, {transform_indices = @transform_5, window_bounds = array<i64: 8, 8, 32>}, {pipeline_mode = #tpu.pipeline_mode<synchronous>, transform_indices = @transform_6, window_bounds = array<i64: 2, 8, 32>}, {pipeline_mode = #tpu.pipeline_mode<synchronous>, transform_indices = @transform_7, window_bounds = array<i64: 2, 8, 32>}]} {
    %c0_i32 = arith.constant 0 : i32
    %0 = arith.cmpi eq, %arg0, %c0_i32 : i32
    %1 = arith.extui %0 : i1 to i32
    %c0_i32_0 = arith.constant 0 : i32
    %2 = arith.cmpi ne, %1, %c0_i32_0 : i32
    scf.if %2 {
      %cst_127 = arith.constant 0.000000e+00 : f32
      %550 = vector.broadcast %cst_127 : f32 to vector<4x8x32xf32>
      %c0_128 = arith.constant 0 : index
      %c0_129 = arith.constant 0 : index
      %c0_130 = arith.constant 0 : index
      %551 = vector.load %arg9[%c0_128, %c0_129, %c0_130] : memref<4x8x32xf32, #tpu.memory_space<vmem>>, vector<4x8x32xf32>
      tpu.vector_store %arg9[%c0_128, %c0_129, %c0_130], %550 {strides = array<i32>} : memref<4x8x32xf32, #tpu.memory_space<vmem>>, vector<4x8x32xf32>,
    } else {
    }
    %c0 = arith.constant 0 : index
    %c0_1 = arith.constant 0 : index
    %3 = vector.load %arg2[%c0, %c0_1] : memref<48x128xf32, #tpu.memory_space<vmem>>, vector<48x128xf32>
    %c0_2 = arith.constant 0 : index
    %c0_3 = arith.constant 0 : index
    %4 = vector.load %arg3[%c0_2, %c0_3] : memref<1x128xf32, #tpu.memory_space<vmem>>, vector<1x128xf32>
    %c0_4 = arith.constant 0 : index
    %c0_5 = arith.constant 0 : index
    %5 = vector.load %arg4[%c0_4, %c0_5] : memref<64x128xf32, #tpu.memory_space<vmem>>, vector<64x128xf32>
    %c0_6 = arith.constant 0 : index
    %c0_7 = arith.constant 0 : index
    %6 = vector.load %arg5[%c0_6, %c0_7] : memref<1x128xf32, #tpu.memory_space<vmem>>, vector<1x128xf32>
    %c0_8 = arith.constant 0 : index
    %c0_9 = arith.constant 0 : index
    %c0_10 = arith.constant 0 : index
    %7 = vector.load %arg9[%c0_8, %c0_9, %c0_10] : memref<4x8x32xf32, #tpu.memory_space<vmem>>, vector<1x8x32xf32>
    %8 = vector.shape_cast %7 : vector<1x8x32xf32> to vector<8x32xf32>
    %c1 = arith.constant 1 : index
    %c0_11 = arith.constant 0 : index
    %c0_12 = arith.constant 0 : index
    %9 = vector.load %arg9[%c1, %c0_11, %c0_12] : memref<4x8x32xf32, #tpu.memory_space<vmem>>, vector<1x8x32xf32>
    %10 = vector.shape_cast %9 : vector<1x8x32xf32> to vector<8x32xf32>
    %c2 = arith.constant 2 : index
    %c0_13 = arith.constant 0 : index
    %c0_14 = arith.constant 0 : index
    %11 = vector.load %arg9[%c2, %c0_13, %c0_14] : memref<4x8x32xf32, #tpu.memory_space<vmem>>, vector<1x8x32xf32>
    %12 = vector.shape_cast %11 : vector<1x8x32xf32> to vector<8x32xf32>
    %c3 = arith.constant 3 : index
    %c0_15 = arith.constant 0 : index
    %c0_16 = arith.constant 0 : index
    %13 = vector.load %arg9[%c3, %c0_15, %c0_16] : memref<4x8x32xf32, #tpu.memory_space<vmem>>, vector<1x8x32xf32>
    %14 = vector.shape_cast %13 : vector<1x8x32xf32> to vector<8x32xf32>
    %c0_i32_17 = arith.constant 0 : i32
    %15 = arith.index_cast %c0_i32_17 : i32 to index
    %c0_18 = arith.constant 0 : index
    %c0_19 = arith.constant 0 : index
    %16 = vector.load %arg1[%15, %c0_18, %c0_19] : memref<8x8x16xf32, #tpu.memory_space<vmem>>, vector<1x8x16xf32>
    %17 = vector.shape_cast %16 : vector<1x8x16xf32> to vector<8x16xf32>
    %18 = tpu.concatenate %17, %8 in 1 : vector<8x16xf32>, vector<8x32xf32> -> vector<8x48xf32>
    %cst = arith.constant dense<0.000000e+00> : vector<8x128xf32>
    %19 = tpu.matmul %18, %3, %cst {dimension_numbers = #tpu.dot_dimension_numbers<[1], [0], [0], [1], [0, 0, 1, 1], [], []>} : vector<8x48xf32>, vector<48x128xf32>, vector<8x128xf32> -> vector<8x128xf32>
    %20 = vector.broadcast %4 : vector<1x128xf32> to vector<8x128xf32>
    %21 = arith.addf %19, %20 : vector<8x128xf32>
    %22 = vector.extract_strided_slice %21 {offsets = [0, 0], sizes = [8, 32], strides = [1, 1]} : vector<8x128xf32> to vector<8x32xf32>
    %23 = arith.negf %22 : vector<8x32xf32>
    %24 = math.exp %23 : vector<8x32xf32>
    %cst_20 = arith.constant 1.000000e+00 : f32
    %25 = vector.broadcast %cst_20 : f32 to vector<8x32xf32>
    %26 = arith.addf %25, %24 : vector<8x32xf32>
    %27 = arith.divf %25, %26 : vector<8x32xf32>
    %28 = vector.extract_strided_slice %21 {offsets = [0, 32], sizes = [8, 32], strides = [1, 1]} : vector<8x128xf32> to vector<8x32xf32>
    %29 = arith.negf %28 : vector<8x32xf32>
    %30 = math.exp %29 : vector<8x32xf32>
    %cst_21 = arith.constant 1.000000e+00 : f32
    %31 = vector.broadcast %cst_21 : f32 to vector<8x32xf32>
    %32 = arith.addf %31, %30 : vector<8x32xf32>
    %33 = arith.divf %31, %32 : vector<8x32xf32>
    %34 = vector.extract_strided_slice %21 {offsets = [0, 64], sizes = [8, 32], strides = [1, 1]} : vector<8x128xf32> to vector<8x32xf32>
    %35 = math.tanh %34 : vector<8x32xf32>
    %36 = vector.extract_strided_slice %21 {offsets = [0, 96], sizes = [8, 32], strides = [1, 1]} : vector<8x128xf32> to vector<8x32xf32>
    %37 = arith.negf %36 : vector<8x32xf32>
    %38 = math.exp %37 : vector<8x32xf32>
    %cst_22 = arith.constant 1.000000e+00 : f32
    %39 = vector.broadcast %cst_22 : f32 to vector<8x32xf32>
    %40 = arith.addf %39, %38 : vector<8x32xf32>
    %41 = arith.divf %39, %40 : vector<8x32xf32>
    %42 = arith.mulf %33, %10 : vector<8x32xf32>
    %43 = arith.mulf %27, %35 : vector<8x32xf32>
    %44 = arith.addf %42, %43 : vector<8x32xf32>
    %45 = math.tanh %44 : vector<8x32xf32>
    %46 = arith.mulf %41, %45 : vector<8x32xf32>
    %47 = tpu.concatenate %46, %12 in 1 : vector<8x32xf32>, vector<8x32xf32> -> vector<8x64xf32>
    %cst_23 = arith.constant dense<0.000000e+00> : vector<8x128xf32>
    %48 = tpu.matmul %47, %5, %cst_23 {dimension_numbers = #tpu.dot_dimension_numbers<[1], [0], [0], [1], [0, 0, 1, 1], [], []>} : vector<8x64xf32>, vector<64x128xf32>, vector<8x128xf32> -> vector<8x128xf32>
    %49 = vector.broadcast %6 : vector<1x128xf32> to vector<8x128xf32>
    %50 = arith.addf %48, %49 : vector<8x128xf32>
    %51 = vector.extract_strided_slice %50 {offsets = [0, 0], sizes = [8, 32], strides = [1, 1]} : vector<8x128xf32> to vector<8x32xf32>
    %52 = arith.negf %51 : vector<8x32xf32>
    %53 = math.exp %52 : vector<8x32xf32>
    %cst_24 = arith.constant 1.000000e+00 : f32
    %54 = vector.broadcast %cst_24 : f32 to vector<8x32xf32>
    %55 = arith.addf %54, %53 : vector<8x32xf32>
    %56 = arith.divf %54, %55 : vector<8x32xf32>
    %57 = vector.extract_strided_slice %50 {offsets = [0, 32], sizes = [8, 32], strides = [1, 1]} : vector<8x128xf32> to vector<8x32xf32>
    %58 = arith.negf %57 : vector<8x32xf32>
    %59 = math.exp %58 : vector<8x32xf32>
    %cst_25 = arith.constant 1.000000e+00 : f32
    %60 = vector.broadcast %cst_25 : f32 to vector<8x32xf32>
    %61 = arith.addf %60, %59 : vector<8x32xf32>
    %62 = arith.divf %60, %61 : vector<8x32xf32>
    %63 = vector.extract_strided_slice %50 {offsets = [0, 64], sizes = [8, 32], strides = [1, 1]} : vector<8x128xf32> to vector<8x32xf32>
    %64 = math.tanh %63 : vector<8x32xf32>
    %65 = vector.extract_strided_slice %50 {offsets = [0, 96], sizes = [8, 32], strides = [1, 1]} : vector<8x128xf32> to vector<8x32xf32>
    %66 = arith.negf %65 : vector<8x32xf32>
    %67 = math.exp %66 : vector<8x32xf32>
    %cst_26 = arith.constant 1.000000e+00 : f32
    %68 = vector.broadcast %cst_26 : f32 to vector<8x32xf32>
    %69 = arith.addf %68, %67 : vector<8x32xf32>
    %70 = arith.divf %68, %69 : vector<8x32xf32>
    %71 = arith.mulf %62, %14 : vector<8x32xf32>
    %72 = arith.mulf %56, %64 : vector<8x32xf32>
    %73 = arith.addf %71, %72 : vector<8x32xf32>
    %74 = math.tanh %73 : vector<8x32xf32>
    %75 = arith.mulf %70, %74 : vector<8x32xf32>
    %76 = arith.index_cast %c0_i32_17 : i32 to index
    %c0_27 = arith.constant 0 : index
    %c0_28 = arith.constant 0 : index
    %77 = vector.load %arg6[%76, %c0_27, %c0_28] : memref<8x8x32xf32, #tpu.memory_space<vmem>>, vector<1x8x32xf32>
    %78 = vector.shape_cast %77 : vector<1x8x32xf32> to vector<8x32xf32>
    %79 = vector.shape_cast %75 : vector<8x32xf32> to vector<1x8x32xf32>
    tpu.vector_store %arg6[%76, %c0_27, %c0_28], %79 {strides = array<i32>} : memref<8x8x32xf32, #tpu.memory_space<vmem>>, vector<1x8x32xf32>,
    %c1_i32 = arith.constant 1 : i32
    %80 = arith.index_cast %c1_i32 : i32 to index
    %c0_29 = arith.constant 0 : index
    %c0_30 = arith.constant 0 : index
    %81 = vector.load %arg1[%80, %c0_29, %c0_30] : memref<8x8x16xf32, #tpu.memory_space<vmem>>, vector<1x8x16xf32>
    %82 = vector.shape_cast %81 : vector<1x8x16xf32> to vector<8x16xf32>
    %83 = tpu.concatenate %82, %46 in 1 : vector<8x16xf32>, vector<8x32xf32> -> vector<8x48xf32>
    %cst_31 = arith.constant dense<0.000000e+00> : vector<8x128xf32>
    %84 = tpu.matmul %83, %3, %cst_31 {dimension_numbers = #tpu.dot_dimension_numbers<[1], [0], [0], [1], [0, 0, 1, 1], [], []>} : vector<8x48xf32>, vector<48x128xf32>, vector<8x128xf32> -> vector<8x128xf32>
    %85 = vector.broadcast %4 : vector<1x128xf32> to vector<8x128xf32>
    %86 = arith.addf %84, %85 : vector<8x128xf32>
    %87 = vector.extract_strided_slice %86 {offsets = [0, 0], sizes = [8, 32], strides = [1, 1]} : vector<8x128xf32> to vector<8x32xf32>
    %88 = arith.negf %87 : vector<8x32xf32>
    %89 = math.exp %88 : vector<8x32xf32>
    %cst_32 = arith.constant 1.000000e+00 : f32
    %90 = vector.broadcast %cst_32 : f32 to vector<8x32xf32>
    %91 = arith.addf %90, %89 : vector<8x32xf32>
    %92 = arith.divf %90, %91 : vector<8x32xf32>
    %93 = vector.extract_strided_slice %86 {offsets = [0, 32], sizes = [8, 32], strides = [1, 1]} : vector<8x128xf32> to vector<8x32xf32>
    %94 = arith.negf %93 : vector<8x32xf32>
    %95 = math.exp %94 : vector<8x32xf32>
    %cst_33 = arith.constant 1.000000e+00 : f32
    %96 = vector.broadcast %cst_33 : f32 to vector<8x32xf32>
    %97 = arith.addf %96, %95 : vector<8x32xf32>
    %98 = arith.divf %96, %97 : vector<8x32xf32>
    %99 = vector.extract_strided_slice %86 {offsets = [0, 64], sizes = [8, 32], strides = [1, 1]} : vector<8x128xf32> to vector<8x32xf32>
    %100 = math.tanh %99 : vector<8x32xf32>
    %101 = vector.extract_strided_slice %86 {offsets = [0, 96], sizes = [8, 32], strides = [1, 1]} : vector<8x128xf32> to vector<8x32xf32>
    %102 = arith.negf %101 : vector<8x32xf32>
    %103 = math.exp %102 : vector<8x32xf32>
    %cst_34 = arith.constant 1.000000e+00 : f32
    %104 = vector.broadcast %cst_34 : f32 to vector<8x32xf32>
    %105 = arith.addf %104, %103 : vector<8x32xf32>
    %106 = arith.divf %104, %105 : vector<8x32xf32>
    %107 = arith.mulf %98, %44 : vector<8x32xf32>
    %108 = arith.mulf %92, %100 : vector<8x32xf32>
    %109 = arith.addf %107, %108 : vector<8x32xf32>
    %110 = math.tanh %109 : vector<8x32xf32>
    %111 = arith.mulf %106, %110 : vector<8x32xf32>
    %112 = tpu.concatenate %111, %75 in 1 : vector<8x32xf32>, vector<8x32xf32> -> vector<8x64xf32>
    %cst_35 = arith.constant dense<0.000000e+00> : vector<8x128xf32>
    %113 = tpu.matmul %112, %5, %cst_35 {dimension_numbers = #tpu.dot_dimension_numbers<[1], [0], [0], [1], [0, 0, 1, 1], [], []>} : vector<8x64xf32>, vector<64x128xf32>, vector<8x128xf32> -> vector<8x128xf32>
    %114 = vector.broadcast %6 : vector<1x128xf32> to vector<8x128xf32>
    %115 = arith.addf %113, %114 : vector<8x128xf32>
    %116 = vector.extract_strided_slice %115 {offsets = [0, 0], sizes = [8, 32], strides = [1, 1]} : vector<8x128xf32> to vector<8x32xf32>
    %117 = arith.negf %116 : vector<8x32xf32>
    %118 = math.exp %117 : vector<8x32xf32>
    %cst_36 = arith.constant 1.000000e+00 : f32
    %119 = vector.broadcast %cst_36 : f32 to vector<8x32xf32>
    %120 = arith.addf %119, %118 : vector<8x32xf32>
    %121 = arith.divf %119, %120 : vector<8x32xf32>
    %122 = vector.extract_strided_slice %115 {offsets = [0, 32], sizes = [8, 32], strides = [1, 1]} : vector<8x128xf32> to vector<8x32xf32>
    %123 = arith.negf %122 : vector<8x32xf32>
    %124 = math.exp %123 : vector<8x32xf32>
    %cst_37 = arith.constant 1.000000e+00 : f32
    %125 = vector.broadcast %cst_37 : f32 to vector<8x32xf32>
    %126 = arith.addf %125, %124 : vector<8x32xf32>
    %127 = arith.divf %125, %126 : vector<8x32xf32>
    %128 = vector.extract_strided_slice %115 {offsets = [0, 64], sizes = [8, 32], strides = [1, 1]} : vector<8x128xf32> to vector<8x32xf32>
    %129 = math.tanh %128 : vector<8x32xf32>
    %130 = vector.extract_strided_slice %115 {offsets = [0, 96], sizes = [8, 32], strides = [1, 1]} : vector<8x128xf32> to vector<8x32xf32>
    %131 = arith.negf %130 : vector<8x32xf32>
    %132 = math.exp %131 : vector<8x32xf32>
    %cst_38 = arith.constant 1.000000e+00 : f32
    %133 = vector.broadcast %cst_38 : f32 to vector<8x32xf32>
    %134 = arith.addf %133, %132 : vector<8x32xf32>
    %135 = arith.divf %133, %134 : vector<8x32xf32>
    %136 = arith.mulf %127, %73 : vector<8x32xf32>
    %137 = arith.mulf %121, %129 : vector<8x32xf32>
    %138 = arith.addf %136, %137 : vector<8x32xf32>
    %139 = math.tanh %138 : vector<8x32xf32>
    %140 = arith.mulf %135, %139 : vector<8x32xf32>
    %141 = arith.index_cast %c1_i32 : i32 to index
    %c0_39 = arith.constant 0 : index
    %c0_40 = arith.constant 0 : index
    %142 = vector.load %arg6[%141, %c0_39, %c0_40] : memref<8x8x32xf32, #tpu.memory_space<vmem>>, vector<1x8x32xf32>
    %143 = vector.shape_cast %142 : vector<1x8x32xf32> to vector<8x32xf32>
    %144 = vector.shape_cast %140 : vector<8x32xf32> to vector<1x8x32xf32>
    tpu.vector_store %arg6[%141, %c0_39, %c0_40], %144 {strides = array<i32>} : memref<8x8x32xf32, #tpu.memory_space<vmem>>, vector<1x8x32xf32>,
    %c2_i32 = arith.constant 2 : i32
    %145 = arith.index_cast %c2_i32 : i32 to index
    %c0_41 = arith.constant 0 : index
    %c0_42 = arith.constant 0 : index
    %146 = vector.load %arg1[%145, %c0_41, %c0_42] : memref<8x8x16xf32, #tpu.memory_space<vmem>>, vector<1x8x16xf32>
    %147 = vector.shape_cast %146 : vector<1x8x16xf32> to vector<8x16xf32>
    %148 = tpu.concatenate %147, %111 in 1 : vector<8x16xf32>, vector<8x32xf32> -> vector<8x48xf32>
    %cst_43 = arith.constant dense<0.000000e+00> : vector<8x128xf32>
    %149 = tpu.matmul %148, %3, %cst_43 {dimension_numbers = #tpu.dot_dimension_numbers<[1], [0], [0], [1], [0, 0, 1, 1], [], []>} : vector<8x48xf32>, vector<48x128xf32>, vector<8x128xf32> -> vector<8x128xf32>
    %150 = vector.broadcast %4 : vector<1x128xf32> to vector<8x128xf32>
    %151 = arith.addf %149, %150 : vector<8x128xf32>
    %152 = vector.extract_strided_slice %151 {offsets = [0, 0], sizes = [8, 32], strides = [1, 1]} : vector<8x128xf32> to vector<8x32xf32>
    %153 = arith.negf %152 : vector<8x32xf32>
    %154 = math.exp %153 : vector<8x32xf32>
    %cst_44 = arith.constant 1.000000e+00 : f32
    %155 = vector.broadcast %cst_44 : f32 to vector<8x32xf32>
    %156 = arith.addf %155, %154 : vector<8x32xf32>
    %157 = arith.divf %155, %156 : vector<8x32xf32>
    %158 = vector.extract_strided_slice %151 {offsets = [0, 32], sizes = [8, 32], strides = [1, 1]} : vector<8x128xf32> to vector<8x32xf32>
    %159 = arith.negf %158 : vector<8x32xf32>
    %160 = math.exp %159 : vector<8x32xf32>
    %cst_45 = arith.constant 1.000000e+00 : f32
    %161 = vector.broadcast %cst_45 : f32 to vector<8x32xf32>
    %162 = arith.addf %161, %160 : vector<8x32xf32>
    %163 = arith.divf %161, %162 : vector<8x32xf32>
    %164 = vector.extract_strided_slice %151 {offsets = [0, 64], sizes = [8, 32], strides = [1, 1]} : vector<8x128xf32> to vector<8x32xf32>
    %165 = math.tanh %164 : vector<8x32xf32>
    %166 = vector.extract_strided_slice %151 {offsets = [0, 96], sizes = [8, 32], strides = [1, 1]} : vector<8x128xf32> to vector<8x32xf32>
    %167 = arith.negf %166 : vector<8x32xf32>
    %168 = math.exp %167 : vector<8x32xf32>
    %cst_46 = arith.constant 1.000000e+00 : f32
    %169 = vector.broadcast %cst_46 : f32 to vector<8x32xf32>
    %170 = arith.addf %169, %168 : vector<8x32xf32>
    %171 = arith.divf %169, %170 : vector<8x32xf32>
    %172 = arith.mulf %163, %109 : vector<8x32xf32>
    %173 = arith.mulf %157, %165 : vector<8x32xf32>
    %174 = arith.addf %172, %173 : vector<8x32xf32>
    %175 = math.tanh %174 : vector<8x32xf32>
    %176 = arith.mulf %171, %175 : vector<8x32xf32>
    %177 = tpu.concatenate %176, %140 in 1 : vector<8x32xf32>, vector<8x32xf32> -> vector<8x64xf32>
    %cst_47 = arith.constant dense<0.000000e+00> : vector<8x128xf32>
    %178 = tpu.matmul %177, %5, %cst_47 {dimension_numbers = #tpu.dot_dimension_numbers<[1], [0], [0], [1], [0, 0, 1, 1], [], []>} : vector<8x64xf32>, vector<64x128xf32>, vector<8x128xf32> -> vector<8x128xf32>
    %179 = vector.broadcast %6 : vector<1x128xf32> to vector<8x128xf32>
    %180 = arith.addf %178, %179 : vector<8x128xf32>
    %181 = vector.extract_strided_slice %180 {offsets = [0, 0], sizes = [8, 32], strides = [1, 1]} : vector<8x128xf32> to vector<8x32xf32>
    %182 = arith.negf %181 : vector<8x32xf32>
    %183 = math.exp %182 : vector<8x32xf32>
    %cst_48 = arith.constant 1.000000e+00 : f32
    %184 = vector.broadcast %cst_48 : f32 to vector<8x32xf32>
    %185 = arith.addf %184, %183 : vector<8x32xf32>
    %186 = arith.divf %184, %185 : vector<8x32xf32>
    %187 = vector.extract_strided_slice %180 {offsets = [0, 32], sizes = [8, 32], strides = [1, 1]} : vector<8x128xf32> to vector<8x32xf32>
    %188 = arith.negf %187 : vector<8x32xf32>
    %189 = math.exp %188 : vector<8x32xf32>
    %cst_49 = arith.constant 1.000000e+00 : f32
    %190 = vector.broadcast %cst_49 : f32 to vector<8x32xf32>
    %191 = arith.addf %190, %189 : vector<8x32xf32>
    %192 = arith.divf %190, %191 : vector<8x32xf32>
    %193 = vector.extract_strided_slice %180 {offsets = [0, 64], sizes = [8, 32], strides = [1, 1]} : vector<8x128xf32> to vector<8x32xf32>
    %194 = math.tanh %193 : vector<8x32xf32>
    %195 = vector.extract_strided_slice %180 {offsets = [0, 96], sizes = [8, 32], strides = [1, 1]} : vector<8x128xf32> to vector<8x32xf32>
    %196 = arith.negf %195 : vector<8x32xf32>
    %197 = math.exp %196 : vector<8x32xf32>
    %cst_50 = arith.constant 1.000000e+00 : f32
    %198 = vector.broadcast %cst_50 : f32 to vector<8x32xf32>
    %199 = arith.addf %198, %197 : vector<8x32xf32>
    %200 = arith.divf %198, %199 : vector<8x32xf32>
    %201 = arith.mulf %192, %138 : vector<8x32xf32>
    %202 = arith.mulf %186, %194 : vector<8x32xf32>
    %203 = arith.addf %201, %202 : vector<8x32xf32>
    %204 = math.tanh %203 : vector<8x32xf32>
    %205 = arith.mulf %200, %204 : vector<8x32xf32>
    %206 = arith.index_cast %c2_i32 : i32 to index
    %c0_51 = arith.constant 0 : index
    %c0_52 = arith.constant 0 : index
    %207 = vector.load %arg6[%206, %c0_51, %c0_52] : memref<8x8x32xf32, #tpu.memory_space<vmem>>, vector<1x8x32xf32>
    %208 = vector.shape_cast %207 : vector<1x8x32xf32> to vector<8x32xf32>
    %209 = vector.shape_cast %205 : vector<8x32xf32> to vector<1x8x32xf32>
    tpu.vector_store %arg6[%206, %c0_51, %c0_52], %209 {strides = array<i32>} : memref<8x8x32xf32, #tpu.memory_space<vmem>>, vector<1x8x32xf32>,
    %c3_i32 = arith.constant 3 : i32
    %210 = arith.index_cast %c3_i32 : i32 to index
    %c0_53 = arith.constant 0 : index
    %c0_54 = arith.constant 0 : index
    %211 = vector.load %arg1[%210, %c0_53, %c0_54] : memref<8x8x16xf32, #tpu.memory_space<vmem>>, vector<1x8x16xf32>
    %212 = vector.shape_cast %211 : vector<1x8x16xf32> to vector<8x16xf32>
    %213 = tpu.concatenate %212, %176 in 1 : vector<8x16xf32>, vector<8x32xf32> -> vector<8x48xf32>
    %cst_55 = arith.constant dense<0.000000e+00> : vector<8x128xf32>
    %214 = tpu.matmul %213, %3, %cst_55 {dimension_numbers = #tpu.dot_dimension_numbers<[1], [0], [0], [1], [0, 0, 1, 1], [], []>} : vector<8x48xf32>, vector<48x128xf32>, vector<8x128xf32> -> vector<8x128xf32>
    %215 = vector.broadcast %4 : vector<1x128xf32> to vector<8x128xf32>
    %216 = arith.addf %214, %215 : vector<8x128xf32>
    %217 = vector.extract_strided_slice %216 {offsets = [0, 0], sizes = [8, 32], strides = [1, 1]} : vector<8x128xf32> to vector<8x32xf32>
    %218 = arith.negf %217 : vector<8x32xf32>
    %219 = math.exp %218 : vector<8x32xf32>
    %cst_56 = arith.constant 1.000000e+00 : f32
    %220 = vector.broadcast %cst_56 : f32 to vector<8x32xf32>
    %221 = arith.addf %220, %219 : vector<8x32xf32>
    %222 = arith.divf %220, %221 : vector<8x32xf32>
    %223 = vector.extract_strided_slice %216 {offsets = [0, 32], sizes = [8, 32], strides = [1, 1]} : vector<8x128xf32> to vector<8x32xf32>
    %224 = arith.negf %223 : vector<8x32xf32>
    %225 = math.exp %224 : vector<8x32xf32>
    %cst_57 = arith.constant 1.000000e+00 : f32
    %226 = vector.broadcast %cst_57 : f32 to vector<8x32xf32>
    %227 = arith.addf %226, %225 : vector<8x32xf32>
    %228 = arith.divf %226, %227 : vector<8x32xf32>
    %229 = vector.extract_strided_slice %216 {offsets = [0, 64], sizes = [8, 32], strides = [1, 1]} : vector<8x128xf32> to vector<8x32xf32>
    %230 = math.tanh %229 : vector<8x32xf32>
    %231 = vector.extract_strided_slice %216 {offsets = [0, 96], sizes = [8, 32], strides = [1, 1]} : vector<8x128xf32> to vector<8x32xf32>
    %232 = arith.negf %231 : vector<8x32xf32>
    %233 = math.exp %232 : vector<8x32xf32>
    %cst_58 = arith.constant 1.000000e+00 : f32
    %234 = vector.broadcast %cst_58 : f32 to vector<8x32xf32>
    %235 = arith.addf %234, %233 : vector<8x32xf32>
    %236 = arith.divf %234, %235 : vector<8x32xf32>
    %237 = arith.mulf %228, %174 : vector<8x32xf32>
    %238 = arith.mulf %222, %230 : vector<8x32xf32>
    %239 = arith.addf %237, %238 : vector<8x32xf32>
    %240 = math.tanh %239 : vector<8x32xf32>
    %241 = arith.mulf %236, %240 : vector<8x32xf32>
    %242 = tpu.concatenate %241, %205 in 1 : vector<8x32xf32>, vector<8x32xf32> -> vector<8x64xf32>
    %cst_59 = arith.constant dense<0.000000e+00> : vector<8x128xf32>
    %243 = tpu.matmul %242, %5, %cst_59 {dimension_numbers = #tpu.dot_dimension_numbers<[1], [0], [0], [1], [0, 0, 1, 1], [], []>} : vector<8x64xf32>, vector<64x128xf32>, vector<8x128xf32> -> vector<8x128xf32>
    %244 = vector.broadcast %6 : vector<1x128xf32> to vector<8x128xf32>
    %245 = arith.addf %243, %244 : vector<8x128xf32>
    %246 = vector.extract_strided_slice %245 {offsets = [0, 0], sizes = [8, 32], strides = [1, 1]} : vector<8x128xf32> to vector<8x32xf32>
    %247 = arith.negf %246 : vector<8x32xf32>
    %248 = math.exp %247 : vector<8x32xf32>
    %cst_60 = arith.constant 1.000000e+00 : f32
    %249 = vector.broadcast %cst_60 : f32 to vector<8x32xf32>
    %250 = arith.addf %249, %248 : vector<8x32xf32>
    %251 = arith.divf %249, %250 : vector<8x32xf32>
    %252 = vector.extract_strided_slice %245 {offsets = [0, 32], sizes = [8, 32], strides = [1, 1]} : vector<8x128xf32> to vector<8x32xf32>
    %253 = arith.negf %252 : vector<8x32xf32>
    %254 = math.exp %253 : vector<8x32xf32>
    %cst_61 = arith.constant 1.000000e+00 : f32
    %255 = vector.broadcast %cst_61 : f32 to vector<8x32xf32>
    %256 = arith.addf %255, %254 : vector<8x32xf32>
    %257 = arith.divf %255, %256 : vector<8x32xf32>
    %258 = vector.extract_strided_slice %245 {offsets = [0, 64], sizes = [8, 32], strides = [1, 1]} : vector<8x128xf32> to vector<8x32xf32>
    %259 = math.tanh %258 : vector<8x32xf32>
    %260 = vector.extract_strided_slice %245 {offsets = [0, 96], sizes = [8, 32], strides = [1, 1]} : vector<8x128xf32> to vector<8x32xf32>
    %261 = arith.negf %260 : vector<8x32xf32>
    %262 = math.exp %261 : vector<8x32xf32>
    %cst_62 = arith.constant 1.000000e+00 : f32
    %263 = vector.broadcast %cst_62 : f32 to vector<8x32xf32>
    %264 = arith.addf %263, %262 : vector<8x32xf32>
    %265 = arith.divf %263, %264 : vector<8x32xf32>
    %266 = arith.mulf %257, %203 : vector<8x32xf32>
    %267 = arith.mulf %251, %259 : vector<8x32xf32>
    %268 = arith.addf %266, %267 : vector<8x32xf32>
    %269 = math.tanh %268 : vector<8x32xf32>
    %270 = arith.mulf %265, %269 : vector<8x32xf32>
    %271 = arith.index_cast %c3_i32 : i32 to index
    %c0_63 = arith.constant 0 : index
    %c0_64 = arith.constant 0 : index
    %272 = vector.load %arg6[%271, %c0_63, %c0_64] : memref<8x8x32xf32, #tpu.memory_space<vmem>>, vector<1x8x32xf32>
    %273 = vector.shape_cast %272 : vector<1x8x32xf32> to vector<8x32xf32>
    %274 = vector.shape_cast %270 : vector<8x32xf32> to vector<1x8x32xf32>
    tpu.vector_store %arg6[%271, %c0_63, %c0_64], %274 {strides = array<i32>} : memref<8x8x32xf32, #tpu.memory_space<vmem>>, vector<1x8x32xf32>,
    %c4_i32 = arith.constant 4 : i32
    %275 = arith.index_cast %c4_i32 : i32 to index
    %c0_65 = arith.constant 0 : index
    %c0_66 = arith.constant 0 : index
    %276 = vector.load %arg1[%275, %c0_65, %c0_66] : memref<8x8x16xf32, #tpu.memory_space<vmem>>, vector<1x8x16xf32>
    %277 = vector.shape_cast %276 : vector<1x8x16xf32> to vector<8x16xf32>
    %278 = tpu.concatenate %277, %241 in 1 : vector<8x16xf32>, vector<8x32xf32> -> vector<8x48xf32>
    %cst_67 = arith.constant dense<0.000000e+00> : vector<8x128xf32>
    %279 = tpu.matmul %278, %3, %cst_67 {dimension_numbers = #tpu.dot_dimension_numbers<[1], [0], [0], [1], [0, 0, 1, 1], [], []>} : vector<8x48xf32>, vector<48x128xf32>, vector<8x128xf32> -> vector<8x128xf32>
    %280 = vector.broadcast %4 : vector<1x128xf32> to vector<8x128xf32>
    %281 = arith.addf %279, %280 : vector<8x128xf32>
    %282 = vector.extract_strided_slice %281 {offsets = [0, 0], sizes = [8, 32], strides = [1, 1]} : vector<8x128xf32> to vector<8x32xf32>
    %283 = arith.negf %282 : vector<8x32xf32>
    %284 = math.exp %283 : vector<8x32xf32>
    %cst_68 = arith.constant 1.000000e+00 : f32
    %285 = vector.broadcast %cst_68 : f32 to vector<8x32xf32>
    %286 = arith.addf %285, %284 : vector<8x32xf32>
    %287 = arith.divf %285, %286 : vector<8x32xf32>
    %288 = vector.extract_strided_slice %281 {offsets = [0, 32], sizes = [8, 32], strides = [1, 1]} : vector<8x128xf32> to vector<8x32xf32>
    %289 = arith.negf %288 : vector<8x32xf32>
    %290 = math.exp %289 : vector<8x32xf32>
    %cst_69 = arith.constant 1.000000e+00 : f32
    %291 = vector.broadcast %cst_69 : f32 to vector<8x32xf32>
    %292 = arith.addf %291, %290 : vector<8x32xf32>
    %293 = arith.divf %291, %292 : vector<8x32xf32>
    %294 = vector.extract_strided_slice %281 {offsets = [0, 64], sizes = [8, 32], strides = [1, 1]} : vector<8x128xf32> to vector<8x32xf32>
    %295 = math.tanh %294 : vector<8x32xf32>
    %296 = vector.extract_strided_slice %281 {offsets = [0, 96], sizes = [8, 32], strides = [1, 1]} : vector<8x128xf32> to vector<8x32xf32>
    %297 = arith.negf %296 : vector<8x32xf32>
    %298 = math.exp %297 : vector<8x32xf32>
    %cst_70 = arith.constant 1.000000e+00 : f32
    %299 = vector.broadcast %cst_70 : f32 to vector<8x32xf32>
    %300 = arith.addf %299, %298 : vector<8x32xf32>
    %301 = arith.divf %299, %300 : vector<8x32xf32>
    %302 = arith.mulf %293, %239 : vector<8x32xf32>
    %303 = arith.mulf %287, %295 : vector<8x32xf32>
    %304 = arith.addf %302, %303 : vector<8x32xf32>
    %305 = math.tanh %304 : vector<8x32xf32>
    %306 = arith.mulf %301, %305 : vector<8x32xf32>
    %307 = tpu.concatenate %306, %270 in 1 : vector<8x32xf32>, vector<8x32xf32> -> vector<8x64xf32>
    %cst_71 = arith.constant dense<0.000000e+00> : vector<8x128xf32>
    %308 = tpu.matmul %307, %5, %cst_71 {dimension_numbers = #tpu.dot_dimension_numbers<[1], [0], [0], [1], [0, 0, 1, 1], [], []>} : vector<8x64xf32>, vector<64x128xf32>, vector<8x128xf32> -> vector<8x128xf32>
    %309 = vector.broadcast %6 : vector<1x128xf32> to vector<8x128xf32>
    %310 = arith.addf %308, %309 : vector<8x128xf32>
    %311 = vector.extract_strided_slice %310 {offsets = [0, 0], sizes = [8, 32], strides = [1, 1]} : vector<8x128xf32> to vector<8x32xf32>
    %312 = arith.negf %311 : vector<8x32xf32>
    %313 = math.exp %312 : vector<8x32xf32>
    %cst_72 = arith.constant 1.000000e+00 : f32
    %314 = vector.broadcast %cst_72 : f32 to vector<8x32xf32>
    %315 = arith.addf %314, %313 : vector<8x32xf32>
    %316 = arith.divf %314, %315 : vector<8x32xf32>
    %317 = vector.extract_strided_slice %310 {offsets = [0, 32], sizes = [8, 32], strides = [1, 1]} : vector<8x128xf32> to vector<8x32xf32>
    %318 = arith.negf %317 : vector<8x32xf32>
    %319 = math.exp %318 : vector<8x32xf32>
    %cst_73 = arith.constant 1.000000e+00 : f32
    %320 = vector.broadcast %cst_73 : f32 to vector<8x32xf32>
    %321 = arith.addf %320, %319 : vector<8x32xf32>
    %322 = arith.divf %320, %321 : vector<8x32xf32>
    %323 = vector.extract_strided_slice %310 {offsets = [0, 64], sizes = [8, 32], strides = [1, 1]} : vector<8x128xf32> to vector<8x32xf32>
    %324 = math.tanh %323 : vector<8x32xf32>
    %325 = vector.extract_strided_slice %310 {offsets = [0, 96], sizes = [8, 32], strides = [1, 1]} : vector<8x128xf32> to vector<8x32xf32>
    %326 = arith.negf %325 : vector<8x32xf32>
    %327 = math.exp %326 : vector<8x32xf32>
    %cst_74 = arith.constant 1.000000e+00 : f32
    %328 = vector.broadcast %cst_74 : f32 to vector<8x32xf32>
    %329 = arith.addf %328, %327 : vector<8x32xf32>
    %330 = arith.divf %328, %329 : vector<8x32xf32>
    %331 = arith.mulf %322, %268 : vector<8x32xf32>
    %332 = arith.mulf %316, %324 : vector<8x32xf32>
    %333 = arith.addf %331, %332 : vector<8x32xf32>
    %334 = math.tanh %333 : vector<8x32xf32>
    %335 = arith.mulf %330, %334 : vector<8x32xf32>
    %336 = arith.index_cast %c4_i32 : i32 to index
    %c0_75 = arith.constant 0 : index
    %c0_76 = arith.constant 0 : index
    %337 = vector.load %arg6[%336, %c0_75, %c0_76] : memref<8x8x32xf32, #tpu.memory_space<vmem>>, vector<1x8x32xf32>
    %338 = vector.shape_cast %337 : vector<1x8x32xf32> to vector<8x32xf32>
    %339 = vector.shape_cast %335 : vector<8x32xf32> to vector<1x8x32xf32>
    tpu.vector_store %arg6[%336, %c0_75, %c0_76], %339 {strides = array<i32>} : memref<8x8x32xf32, #tpu.memory_space<vmem>>, vector<1x8x32xf32>,
    %c5_i32 = arith.constant 5 : i32
    %340 = arith.index_cast %c5_i32 : i32 to index
    %c0_77 = arith.constant 0 : index
    %c0_78 = arith.constant 0 : index
    %341 = vector.load %arg1[%340, %c0_77, %c0_78] : memref<8x8x16xf32, #tpu.memory_space<vmem>>, vector<1x8x16xf32>
    %342 = vector.shape_cast %341 : vector<1x8x16xf32> to vector<8x16xf32>
    %343 = tpu.concatenate %342, %306 in 1 : vector<8x16xf32>, vector<8x32xf32> -> vector<8x48xf32>
    %cst_79 = arith.constant dense<0.000000e+00> : vector<8x128xf32>
    %344 = tpu.matmul %343, %3, %cst_79 {dimension_numbers = #tpu.dot_dimension_numbers<[1], [0], [0], [1], [0, 0, 1, 1], [], []>} : vector<8x48xf32>, vector<48x128xf32>, vector<8x128xf32> -> vector<8x128xf32>
    %345 = vector.broadcast %4 : vector<1x128xf32> to vector<8x128xf32>
    %346 = arith.addf %344, %345 : vector<8x128xf32>
    %347 = vector.extract_strided_slice %346 {offsets = [0, 0], sizes = [8, 32], strides = [1, 1]} : vector<8x128xf32> to vector<8x32xf32>
    %348 = arith.negf %347 : vector<8x32xf32>
    %349 = math.exp %348 : vector<8x32xf32>
    %cst_80 = arith.constant 1.000000e+00 : f32
    %350 = vector.broadcast %cst_80 : f32 to vector<8x32xf32>
    %351 = arith.addf %350, %349 : vector<8x32xf32>
    %352 = arith.divf %350, %351 : vector<8x32xf32>
    %353 = vector.extract_strided_slice %346 {offsets = [0, 32], sizes = [8, 32], strides = [1, 1]} : vector<8x128xf32> to vector<8x32xf32>
    %354 = arith.negf %353 : vector<8x32xf32>
    %355 = math.exp %354 : vector<8x32xf32>
    %cst_81 = arith.constant 1.000000e+00 : f32
    %356 = vector.broadcast %cst_81 : f32 to vector<8x32xf32>
    %357 = arith.addf %356, %355 : vector<8x32xf32>
    %358 = arith.divf %356, %357 : vector<8x32xf32>
    %359 = vector.extract_strided_slice %346 {offsets = [0, 64], sizes = [8, 32], strides = [1, 1]} : vector<8x128xf32> to vector<8x32xf32>
    %360 = math.tanh %359 : vector<8x32xf32>
    %361 = vector.extract_strided_slice %346 {offsets = [0, 96], sizes = [8, 32], strides = [1, 1]} : vector<8x128xf32> to vector<8x32xf32>
    %362 = arith.negf %361 : vector<8x32xf32>
    %363 = math.exp %362 : vector<8x32xf32>
    %cst_82 = arith.constant 1.000000e+00 : f32
    %364 = vector.broadcast %cst_82 : f32 to vector<8x32xf32>
    %365 = arith.addf %364, %363 : vector<8x32xf32>
    %366 = arith.divf %364, %365 : vector<8x32xf32>
    %367 = arith.mulf %358, %304 : vector<8x32xf32>
    %368 = arith.mulf %352, %360 : vector<8x32xf32>
    %369 = arith.addf %367, %368 : vector<8x32xf32>
    %370 = math.tanh %369 : vector<8x32xf32>
    %371 = arith.mulf %366, %370 : vector<8x32xf32>
    %372 = tpu.concatenate %371, %335 in 1 : vector<8x32xf32>, vector<8x32xf32> -> vector<8x64xf32>
    %cst_83 = arith.constant dense<0.000000e+00> : vector<8x128xf32>
    %373 = tpu.matmul %372, %5, %cst_83 {dimension_numbers = #tpu.dot_dimension_numbers<[1], [0], [0], [1], [0, 0, 1, 1], [], []>} : vector<8x64xf32>, vector<64x128xf32>, vector<8x128xf32> -> vector<8x128xf32>
    %374 = vector.broadcast %6 : vector<1x128xf32> to vector<8x128xf32>
    %375 = arith.addf %373, %374 : vector<8x128xf32>
    %376 = vector.extract_strided_slice %375 {offsets = [0, 0], sizes = [8, 32], strides = [1, 1]} : vector<8x128xf32> to vector<8x32xf32>
    %377 = arith.negf %376 : vector<8x32xf32>
    %378 = math.exp %377 : vector<8x32xf32>
    %cst_84 = arith.constant 1.000000e+00 : f32
    %379 = vector.broadcast %cst_84 : f32 to vector<8x32xf32>
    %380 = arith.addf %379, %378 : vector<8x32xf32>
    %381 = arith.divf %379, %380 : vector<8x32xf32>
    %382 = vector.extract_strided_slice %375 {offsets = [0, 32], sizes = [8, 32], strides = [1, 1]} : vector<8x128xf32> to vector<8x32xf32>
    %383 = arith.negf %382 : vector<8x32xf32>
    %384 = math.exp %383 : vector<8x32xf32>
    %cst_85 = arith.constant 1.000000e+00 : f32
    %385 = vector.broadcast %cst_85 : f32 to vector<8x32xf32>
    %386 = arith.addf %385, %384 : vector<8x32xf32>
    %387 = arith.divf %385, %386 : vector<8x32xf32>
    %388 = vector.extract_strided_slice %375 {offsets = [0, 64], sizes = [8, 32], strides = [1, 1]} : vector<8x128xf32> to vector<8x32xf32>
    %389 = math.tanh %388 : vector<8x32xf32>
    %390 = vector.extract_strided_slice %375 {offsets = [0, 96], sizes = [8, 32], strides = [1, 1]} : vector<8x128xf32> to vector<8x32xf32>
    %391 = arith.negf %390 : vector<8x32xf32>
    %392 = math.exp %391 : vector<8x32xf32>
    %cst_86 = arith.constant 1.000000e+00 : f32
    %393 = vector.broadcast %cst_86 : f32 to vector<8x32xf32>
    %394 = arith.addf %393, %392 : vector<8x32xf32>
    %395 = arith.divf %393, %394 : vector<8x32xf32>
    %396 = arith.mulf %387, %333 : vector<8x32xf32>
    %397 = arith.mulf %381, %389 : vector<8x32xf32>
    %398 = arith.addf %396, %397 : vector<8x32xf32>
    %399 = math.tanh %398 : vector<8x32xf32>
    %400 = arith.mulf %395, %399 : vector<8x32xf32>
    %401 = arith.index_cast %c5_i32 : i32 to index
    %c0_87 = arith.constant 0 : index
    %c0_88 = arith.constant 0 : index
    %402 = vector.load %arg6[%401, %c0_87, %c0_88] : memref<8x8x32xf32, #tpu.memory_space<vmem>>, vector<1x8x32xf32>
    %403 = vector.shape_cast %402 : vector<1x8x32xf32> to vector<8x32xf32>
    %404 = vector.shape_cast %400 : vector<8x32xf32> to vector<1x8x32xf32>
    tpu.vector_store %arg6[%401, %c0_87, %c0_88], %404 {strides = array<i32>} : memref<8x8x32xf32, #tpu.memory_space<vmem>>, vector<1x8x32xf32>,
    %c6_i32 = arith.constant 6 : i32
    %405 = arith.index_cast %c6_i32 : i32 to index
    %c0_89 = arith.constant 0 : index
    %c0_90 = arith.constant 0 : index
    %406 = vector.load %arg1[%405, %c0_89, %c0_90] : memref<8x8x16xf32, #tpu.memory_space<vmem>>, vector<1x8x16xf32>
    %407 = vector.shape_cast %406 : vector<1x8x16xf32> to vector<8x16xf32>
    %408 = tpu.concatenate %407, %371 in 1 : vector<8x16xf32>, vector<8x32xf32> -> vector<8x48xf32>
    %cst_91 = arith.constant dense<0.000000e+00> : vector<8x128xf32>
    %409 = tpu.matmul %408, %3, %cst_91 {dimension_numbers = #tpu.dot_dimension_numbers<[1], [0], [0], [1], [0, 0, 1, 1], [], []>} : vector<8x48xf32>, vector<48x128xf32>, vector<8x128xf32> -> vector<8x128xf32>
    %410 = vector.broadcast %4 : vector<1x128xf32> to vector<8x128xf32>
    %411 = arith.addf %409, %410 : vector<8x128xf32>
    %412 = vector.extract_strided_slice %411 {offsets = [0, 0], sizes = [8, 32], strides = [1, 1]} : vector<8x128xf32> to vector<8x32xf32>
    %413 = arith.negf %412 : vector<8x32xf32>
    %414 = math.exp %413 : vector<8x32xf32>
    %cst_92 = arith.constant 1.000000e+00 : f32
    %415 = vector.broadcast %cst_92 : f32 to vector<8x32xf32>
    %416 = arith.addf %415, %414 : vector<8x32xf32>
    %417 = arith.divf %415, %416 : vector<8x32xf32>
    %418 = vector.extract_strided_slice %411 {offsets = [0, 32], sizes = [8, 32], strides = [1, 1]} : vector<8x128xf32> to vector<8x32xf32>
    %419 = arith.negf %418 : vector<8x32xf32>
    %420 = math.exp %419 : vector<8x32xf32>
    %cst_93 = arith.constant 1.000000e+00 : f32
    %421 = vector.broadcast %cst_93 : f32 to vector<8x32xf32>
    %422 = arith.addf %421, %420 : vector<8x32xf32>
    %423 = arith.divf %421, %422 : vector<8x32xf32>
    %424 = vector.extract_strided_slice %411 {offsets = [0, 64], sizes = [8, 32], strides = [1, 1]} : vector<8x128xf32> to vector<8x32xf32>
    %425 = math.tanh %424 : vector<8x32xf32>
    %426 = vector.extract_strided_slice %411 {offsets = [0, 96], sizes = [8, 32], strides = [1, 1]} : vector<8x128xf32> to vector<8x32xf32>
    %427 = arith.negf %426 : vector<8x32xf32>
    %428 = math.exp %427 : vector<8x32xf32>
    %cst_94 = arith.constant 1.000000e+00 : f32
    %429 = vector.broadcast %cst_94 : f32 to vector<8x32xf32>
    %430 = arith.addf %429, %428 : vector<8x32xf32>
    %431 = arith.divf %429, %430 : vector<8x32xf32>
    %432 = arith.mulf %423, %369 : vector<8x32xf32>
    %433 = arith.mulf %417, %425 : vector<8x32xf32>
    %434 = arith.addf %432, %433 : vector<8x32xf32>
    %435 = math.tanh %434 : vector<8x32xf32>
    %436 = arith.mulf %431, %435 : vector<8x32xf32>
    %437 = tpu.concatenate %436, %400 in 1 : vector<8x32xf32>, vector<8x32xf32> -> vector<8x64xf32>
    %cst_95 = arith.constant dense<0.000000e+00> : vector<8x128xf32>
    %438 = tpu.matmul %437, %5, %cst_95 {dimension_numbers = #tpu.dot_dimension_numbers<[1], [0], [0], [1], [0, 0, 1, 1], [], []>} : vector<8x64xf32>, vector<64x128xf32>, vector<8x128xf32> -> vector<8x128xf32>
    %439 = vector.broadcast %6 : vector<1x128xf32> to vector<8x128xf32>
    %440 = arith.addf %438, %439 : vector<8x128xf32>
    %441 = vector.extract_strided_slice %440 {offsets = [0, 0], sizes = [8, 32], strides = [1, 1]} : vector<8x128xf32> to vector<8x32xf32>
    %442 = arith.negf %441 : vector<8x32xf32>
    %443 = math.exp %442 : vector<8x32xf32>
    %cst_96 = arith.constant 1.000000e+00 : f32
    %444 = vector.broadcast %cst_96 : f32 to vector<8x32xf32>
    %445 = arith.addf %444, %443 : vector<8x32xf32>
    %446 = arith.divf %444, %445 : vector<8x32xf32>
    %447 = vector.extract_strided_slice %440 {offsets = [0, 32], sizes = [8, 32], strides = [1, 1]} : vector<8x128xf32> to vector<8x32xf32>
    %448 = arith.negf %447 : vector<8x32xf32>
    %449 = math.exp %448 : vector<8x32xf32>
    %cst_97 = arith.constant 1.000000e+00 : f32
    %450 = vector.broadcast %cst_97 : f32 to vector<8x32xf32>
    %451 = arith.addf %450, %449 : vector<8x32xf32>
    %452 = arith.divf %450, %451 : vector<8x32xf32>
    %453 = vector.extract_strided_slice %440 {offsets = [0, 64], sizes = [8, 32], strides = [1, 1]} : vector<8x128xf32> to vector<8x32xf32>
    %454 = math.tanh %453 : vector<8x32xf32>
    %455 = vector.extract_strided_slice %440 {offsets = [0, 96], sizes = [8, 32], strides = [1, 1]} : vector<8x128xf32> to vector<8x32xf32>
    %456 = arith.negf %455 : vector<8x32xf32>
    %457 = math.exp %456 : vector<8x32xf32>
    %cst_98 = arith.constant 1.000000e+00 : f32
    %458 = vector.broadcast %cst_98 : f32 to vector<8x32xf32>
    %459 = arith.addf %458, %457 : vector<8x32xf32>
    %460 = arith.divf %458, %459 : vector<8x32xf32>
    %461 = arith.mulf %452, %398 : vector<8x32xf32>
    %462 = arith.mulf %446, %454 : vector<8x32xf32>
    %463 = arith.addf %461, %462 : vector<8x32xf32>
    %464 = math.tanh %463 : vector<8x32xf32>
    %465 = arith.mulf %460, %464 : vector<8x32xf32>
    %466 = arith.index_cast %c6_i32 : i32 to index
    %c0_99 = arith.constant 0 : index
    %c0_100 = arith.constant 0 : index
    %467 = vector.load %arg6[%466, %c0_99, %c0_100] : memref<8x8x32xf32, #tpu.memory_space<vmem>>, vector<1x8x32xf32>
    %468 = vector.shape_cast %467 : vector<1x8x32xf32> to vector<8x32xf32>
    %469 = vector.shape_cast %465 : vector<8x32xf32> to vector<1x8x32xf32>
    tpu.vector_store %arg6[%466, %c0_99, %c0_100], %469 {strides = array<i32>} : memref<8x8x32xf32, #tpu.memory_space<vmem>>, vector<1x8x32xf32>,
    %c7_i32 = arith.constant 7 : i32
    %470 = arith.index_cast %c7_i32 : i32 to index
    %c0_101 = arith.constant 0 : index
    %c0_102 = arith.constant 0 : index
    %471 = vector.load %arg1[%470, %c0_101, %c0_102] : memref<8x8x16xf32, #tpu.memory_space<vmem>>, vector<1x8x16xf32>
    %472 = vector.shape_cast %471 : vector<1x8x16xf32> to vector<8x16xf32>
    %473 = tpu.concatenate %472, %436 in 1 : vector<8x16xf32>, vector<8x32xf32> -> vector<8x48xf32>
    %cst_103 = arith.constant dense<0.000000e+00> : vector<8x128xf32>
    %474 = tpu.matmul %473, %3, %cst_103 {dimension_numbers = #tpu.dot_dimension_numbers<[1], [0], [0], [1], [0, 0, 1, 1], [], []>} : vector<8x48xf32>, vector<48x128xf32>, vector<8x128xf32> -> vector<8x128xf32>
    %475 = vector.broadcast %4 : vector<1x128xf32> to vector<8x128xf32>
    %476 = arith.addf %474, %475 : vector<8x128xf32>
    %477 = vector.extract_strided_slice %476 {offsets = [0, 0], sizes = [8, 32], strides = [1, 1]} : vector<8x128xf32> to vector<8x32xf32>
    %478 = arith.negf %477 : vector<8x32xf32>
    %479 = math.exp %478 : vector<8x32xf32>
    %cst_104 = arith.constant 1.000000e+00 : f32
    %480 = vector.broadcast %cst_104 : f32 to vector<8x32xf32>
    %481 = arith.addf %480, %479 : vector<8x32xf32>
    %482 = arith.divf %480, %481 : vector<8x32xf32>
    %483 = vector.extract_strided_slice %476 {offsets = [0, 32], sizes = [8, 32], strides = [1, 1]} : vector<8x128xf32> to vector<8x32xf32>
    %484 = arith.negf %483 : vector<8x32xf32>
    %485 = math.exp %484 : vector<8x32xf32>
    %cst_105 = arith.constant 1.000000e+00 : f32
    %486 = vector.broadcast %cst_105 : f32 to vector<8x32xf32>
    %487 = arith.addf %486, %485 : vector<8x32xf32>
    %488 = arith.divf %486, %487 : vector<8x32xf32>
    %489 = vector.extract_strided_slice %476 {offsets = [0, 64], sizes = [8, 32], strides = [1, 1]} : vector<8x128xf32> to vector<8x32xf32>
    %490 = math.tanh %489 : vector<8x32xf32>
    %491 = vector.extract_strided_slice %476 {offsets = [0, 96], sizes = [8, 32], strides = [1, 1]} : vector<8x128xf32> to vector<8x32xf32>
    %492 = arith.negf %491 : vector<8x32xf32>
    %493 = math.exp %492 : vector<8x32xf32>
    %cst_106 = arith.constant 1.000000e+00 : f32
    %494 = vector.broadcast %cst_106 : f32 to vector<8x32xf32>
    %495 = arith.addf %494, %493 : vector<8x32xf32>
    %496 = arith.divf %494, %495 : vector<8x32xf32>
    %497 = arith.mulf %488, %434 : vector<8x32xf32>
    %498 = arith.mulf %482, %490 : vector<8x32xf32>
    %499 = arith.addf %497, %498 : vector<8x32xf32>
    %500 = math.tanh %499 : vector<8x32xf32>
    %501 = arith.mulf %496, %500 : vector<8x32xf32>
    %502 = tpu.concatenate %501, %465 in 1 : vector<8x32xf32>, vector<8x32xf32> -> vector<8x64xf32>
    %cst_107 = arith.constant dense<0.000000e+00> : vector<8x128xf32>
    %503 = tpu.matmul %502, %5, %cst_107 {dimension_numbers = #tpu.dot_dimension_numbers<[1], [0], [0], [1], [0, 0, 1, 1], [], []>} : vector<8x64xf32>, vector<64x128xf32>, vector<8x128xf32> -> vector<8x128xf32>
    %504 = vector.broadcast %6 : vector<1x128xf32> to vector<8x128xf32>
    %505 = arith.addf %503, %504 : vector<8x128xf32>
    %506 = vector.extract_strided_slice %505 {offsets = [0, 0], sizes = [8, 32], strides = [1, 1]} : vector<8x128xf32> to vector<8x32xf32>
    %507 = arith.negf %506 : vector<8x32xf32>
    %508 = math.exp %507 : vector<8x32xf32>
    %cst_108 = arith.constant 1.000000e+00 : f32
    %509 = vector.broadcast %cst_108 : f32 to vector<8x32xf32>
    %510 = arith.addf %509, %508 : vector<8x32xf32>
    %511 = arith.divf %509, %510 : vector<8x32xf32>
    %512 = vector.extract_strided_slice %505 {offsets = [0, 32], sizes = [8, 32], strides = [1, 1]} : vector<8x128xf32> to vector<8x32xf32>
    %513 = arith.negf %512 : vector<8x32xf32>
    %514 = math.exp %513 : vector<8x32xf32>
    %cst_109 = arith.constant 1.000000e+00 : f32
    %515 = vector.broadcast %cst_109 : f32 to vector<8x32xf32>
    %516 = arith.addf %515, %514 : vector<8x32xf32>
    %517 = arith.divf %515, %516 : vector<8x32xf32>
    %518 = vector.extract_strided_slice %505 {offsets = [0, 64], sizes = [8, 32], strides = [1, 1]} : vector<8x128xf32> to vector<8x32xf32>
    %519 = math.tanh %518 : vector<8x32xf32>
    %520 = vector.extract_strided_slice %505 {offsets = [0, 96], sizes = [8, 32], strides = [1, 1]} : vector<8x128xf32> to vector<8x32xf32>
    %521 = arith.negf %520 : vector<8x32xf32>
    %522 = math.exp %521 : vector<8x32xf32>
    %cst_110 = arith.constant 1.000000e+00 : f32
    %523 = vector.broadcast %cst_110 : f32 to vector<8x32xf32>
    %524 = arith.addf %523, %522 : vector<8x32xf32>
    %525 = arith.divf %523, %524 : vector<8x32xf32>
    %526 = arith.mulf %517, %463 : vector<8x32xf32>
    %527 = arith.mulf %511, %519 : vector<8x32xf32>
    %528 = arith.addf %526, %527 : vector<8x32xf32>
    %529 = math.tanh %528 : vector<8x32xf32>
    %530 = arith.mulf %525, %529 : vector<8x32xf32>
    %531 = arith.index_cast %c7_i32 : i32 to index
    %c0_111 = arith.constant 0 : index
    %c0_112 = arith.constant 0 : index
    %532 = vector.load %arg6[%531, %c0_111, %c0_112] : memref<8x8x32xf32, #tpu.memory_space<vmem>>, vector<1x8x32xf32>
    %533 = vector.shape_cast %532 : vector<1x8x32xf32> to vector<8x32xf32>
    %534 = vector.shape_cast %530 : vector<8x32xf32> to vector<1x8x32xf32>
    tpu.vector_store %arg6[%531, %c0_111, %c0_112], %534 {strides = array<i32>} : memref<8x8x32xf32, #tpu.memory_space<vmem>>, vector<1x8x32xf32>,
    %c8_i32 = arith.constant 8 : i32
    %c0_113 = arith.constant 0 : index
    %c0_114 = arith.constant 0 : index
    %c0_115 = arith.constant 0 : index
    %535 = vector.load %arg9[%c0_113, %c0_114, %c0_115] : memref<4x8x32xf32, #tpu.memory_space<vmem>>, vector<1x8x32xf32>
    %536 = vector.shape_cast %535 : vector<1x8x32xf32> to vector<8x32xf32>
    %537 = vector.shape_cast %501 : vector<8x32xf32> to vector<1x8x32xf32>
    tpu.vector_store %arg9[%c0_113, %c0_114, %c0_115], %537 {strides = array<i32>} : memref<4x8x32xf32, #tpu.memory_space<vmem>>, vector<1x8x32xf32>,
    %c1_116 = arith.constant 1 : index
    %c0_117 = arith.constant 0 : index
    %c0_118 = arith.constant 0 : index
    %538 = vector.load %arg9[%c1_116, %c0_117, %c0_118] : memref<4x8x32xf32, #tpu.memory_space<vmem>>, vector<1x8x32xf32>
    %539 = vector.shape_cast %538 : vector<1x8x32xf32> to vector<8x32xf32>
    %540 = vector.shape_cast %499 : vector<8x32xf32> to vector<1x8x32xf32>
    tpu.vector_store %arg9[%c1_116, %c0_117, %c0_118], %540 {strides = array<i32>} : memref<4x8x32xf32, #tpu.memory_space<vmem>>, vector<1x8x32xf32>,
    %c2_119 = arith.constant 2 : index
    %c0_120 = arith.constant 0 : index
    %c0_121 = arith.constant 0 : index
    %541 = vector.load %arg9[%c2_119, %c0_120, %c0_121] : memref<4x8x32xf32, #tpu.memory_space<vmem>>, vector<1x8x32xf32>
    %542 = vector.shape_cast %541 : vector<1x8x32xf32> to vector<8x32xf32>
    %543 = vector.shape_cast %530 : vector<8x32xf32> to vector<1x8x32xf32>
    tpu.vector_store %arg9[%c2_119, %c0_120, %c0_121], %543 {strides = array<i32>} : memref<4x8x32xf32, #tpu.memory_space<vmem>>, vector<1x8x32xf32>,
    %c3_122 = arith.constant 3 : index
    %c0_123 = arith.constant 0 : index
    %c0_124 = arith.constant 0 : index
    %544 = vector.load %arg9[%c3_122, %c0_123, %c0_124] : memref<4x8x32xf32, #tpu.memory_space<vmem>>, vector<1x8x32xf32>
    %545 = vector.shape_cast %544 : vector<1x8x32xf32> to vector<8x32xf32>
    %546 = vector.shape_cast %528 : vector<8x32xf32> to vector<1x8x32xf32>
    tpu.vector_store %arg9[%c3_122, %c0_123, %c0_124], %546 {strides = array<i32>} : memref<4x8x32xf32, #tpu.memory_space<vmem>>, vector<1x8x32xf32>,
    %c0_i32_125 = arith.constant 0 : i32
    %547 = arith.cmpi eq, %arg0, %c0_i32_125 : i32
    %548 = arith.extui %547 : i1 to i32
    %c0_i32_126 = arith.constant 0 : i32
    %549 = arith.cmpi ne, %548, %c0_i32_126 : i32
    scf.if %549 {
      %c0_127 = arith.constant 0 : index
      %c0_128 = arith.constant 0 : index
      %c0_129 = arith.constant 0 : index
      %550 = vector.load %arg7[%c0_127, %c0_128, %c0_129] : memref<2x8x32xf32, #tpu.memory_space<vmem>>, vector<1x8x32xf32>
      %551 = vector.shape_cast %550 : vector<1x8x32xf32> to vector<8x32xf32>
      %552 = vector.shape_cast %501 : vector<8x32xf32> to vector<1x8x32xf32>
      tpu.vector_store %arg7[%c0_127, %c0_128, %c0_129], %552 {strides = array<i32>} : memref<2x8x32xf32, #tpu.memory_space<vmem>>, vector<1x8x32xf32>,
      %c1_130 = arith.constant 1 : index
      %c0_131 = arith.constant 0 : index
      %c0_132 = arith.constant 0 : index
      %553 = vector.load %arg7[%c1_130, %c0_131, %c0_132] : memref<2x8x32xf32, #tpu.memory_space<vmem>>, vector<1x8x32xf32>
      %554 = vector.shape_cast %553 : vector<1x8x32xf32> to vector<8x32xf32>
      %555 = vector.shape_cast %530 : vector<8x32xf32> to vector<1x8x32xf32>
      tpu.vector_store %arg7[%c1_130, %c0_131, %c0_132], %555 {strides = array<i32>} : memref<2x8x32xf32, #tpu.memory_space<vmem>>, vector<1x8x32xf32>,
      %c0_133 = arith.constant 0 : index
      %c0_134 = arith.constant 0 : index
      %c0_135 = arith.constant 0 : index
      %556 = vector.load %arg8[%c0_133, %c0_134, %c0_135] : memref<2x8x32xf32, #tpu.memory_space<vmem>>, vector<1x8x32xf32>
      %557 = vector.shape_cast %556 : vector<1x8x32xf32> to vector<8x32xf32>
      %558 = vector.shape_cast %499 : vector<8x32xf32> to vector<1x8x32xf32>
      tpu.vector_store %arg8[%c0_133, %c0_134, %c0_135], %558 {strides = array<i32>} : memref<2x8x32xf32, #tpu.memory_space<vmem>>, vector<1x8x32xf32>,
      %c1_136 = arith.constant 1 : index
      %c0_137 = arith.constant 0 : index
      %c0_138 = arith.constant 0 : index
      %559 = vector.load %arg8[%c1_136, %c0_137, %c0_138] : memref<2x8x32xf32, #tpu.memory_space<vmem>>, vector<1x8x32xf32>
      %560 = vector.shape_cast %559 : vector<1x8x32xf32> to vector<8x32xf32>
      %561 = vector.shape_cast %528 : vector<8x32xf32> to vector<1x8x32xf32>
      tpu.vector_store %arg8[%c1_136, %c0_137, %c0_138], %561 {strides = array<i32>} : memref<2x8x32xf32, #tpu.memory_space<vmem>>, vector<1x8x32xf32>,
    } else {
    }
    return
  }
  func.func @transform_0(%arg0: i32) -> (i32, i32, i32) {
    %c0_i32 = arith.constant 0 : i32
    %c0_i32_0 = arith.constant 0 : i32
    %c0_i32_1 = arith.constant 0 : i32
    return %arg0, %c0_i32, %c0_i32_0 : i32, i32, i32
  }
  func.func @transform_1(%arg0: i32) -> (i32, i32) {
    %c0_i32 = arith.constant 0 : i32
    %c0_i32_0 = arith.constant 0 : i32
    %c0_i32_1 = arith.constant 0 : i32
    return %c0_i32, %c0_i32_0 : i32, i32
  }
  func.func @transform_2(%arg0: i32) -> (i32, i32) {
    %c0_i32 = arith.constant 0 : i32
    %c0_i32_0 = arith.constant 0 : i32
    %c0_i32_1 = arith.constant 0 : i32
    return %c0_i32, %c0_i32_0 : i32, i32
  }
  func.func @transform_3(%arg0: i32) -> (i32, i32) {
    %c0_i32 = arith.constant 0 : i32
    %c0_i32_0 = arith.constant 0 : i32
    %c0_i32_1 = arith.constant 0 : i32
    return %c0_i32, %c0_i32_0 : i32, i32
  }
  func.func @transform_4(%arg0: i32) -> (i32, i32) {
    %c0_i32 = arith.constant 0 : i32
    %c0_i32_0 = arith.constant 0 : i32
    %c0_i32_1 = arith.constant 0 : i32
    return %c0_i32, %c0_i32_0 : i32, i32
  }
  func.func @transform_5(%arg0: i32) -> (i32, i32, i32) {
    %c0_i32 = arith.constant 0 : i32
    %c0_i32_0 = arith.constant 0 : i32
    %c0_i32_1 = arith.constant 0 : i32
    return %arg0, %c0_i32, %c0_i32_0 : i32, i32, i32
  }
  func.func @transform_6(%arg0: i32) -> (i32, i32, i32) {
    %c0_i32 = arith.constant 0 : i32
    %c0_i32_0 = arith.constant 0 : i32
    %c0_i32_1 = arith.constant 0 : i32
    %c0_i32_2 = arith.constant 0 : i32
    return %c0_i32, %c0_i32_0, %c0_i32_1 : i32, i32, i32
  }
  func.func @transform_7(%arg0: i32) -> (i32, i32, i32) {
    %c0_i32 = arith.constant 0 : i32
    %c0_i32_0 = arith.constant 0 : i32
    %c0_i32_1 = arith.constant 0 : i32
    %c0_i32_2 = arith.constant 0 : i32
    return %c0_i32, %c0_i32_0, %c0_i32_1 : i32, i32, i32
  }
}

</mosaic_0001>

<llo_original>
// kernel: tpu_custom_call.1
$region0: #{tpu_custom_call.1}
  #allocation0 [shape = 'u32[]', space=smem, size = 0x4, offset = 0x4, fixed_abs, tag = 'smem constant byte address 0x4 - core index']
  #allocation1 [shape = 'u32[144,128]{1,0:T(1,128)}', space=vmem, size = 0x12000, scoped, tag = 'internal scratch']
  #allocation2 [shape = 'f32[4,8,32]{2,1,0:T(8,128)}', space=vmem, size = 0x4000, scoped, tag = 'scratch operand']
  %s0 = inlined_call_operand.hbm [shape: f32[8,8,16], index: 0, kind: input, shape index: {}]
  %s1 = inlined_call_operand.hbm [shape: f32[48,128], index: 1, kind: input, shape index: {}]
  %s2 = inlined_call_operand.vmem [shape: f32[1,128], index: 2, kind: input, shape index: {}]
  %s3 = inlined_call_operand.hbm [shape: f32[64,128], index: 3, kind: input, shape index: {}]
  %s4 = inlined_call_operand.vmem [shape: f32[1,128], index: 4, kind: input, shape index: {}]
  %s5 = inlined_call_operand.hbm [shape: f32[8,8,32], index: 5, kind: output, shape index: {0}]
  %s6 = inlined_call_operand.hbm [shape: f32[2,8,32], index: 6, kind: output, shape index: {1}]
  %s7 = inlined_call_operand.hbm [shape: f32[2,8,32], index: 7, kind: output, shape index: {2}]
  %8 = xla_tuple %s5, %s6, %s7
  %s9 = sld [smem:[#allocation0]]
  $region66: #{tpu_custom_call.1} parent=0
    _
  %s11 = ssub.s32 1, %s9
  %s12 = scalar_select 0, %s11, %s9
  $region1: #{tpu_custom_call.1} parent=0
    #allocation3 [shape = 'u8[32768]{0}', space=vmem, size = 0x8000, scoped, tag = 'input window, operand 0, single buffered']
    #allocation4 [shape = 's32[1]{0}', space=sflag, size = 0x4, scoped, tag = 'scoped memory for tpu_custom_call.1']
    #allocation5 [shape = 's32[1]{0}', space=sflag, size = 0x4, scoped, tag = 'scoped memory for tpu_custom_call.1']
    #allocation6 [shape = 'u8[24576]{0}', space=vmem, size = 0x6000, scoped, tag = 'input window, operand 1, single buffered']
    #allocation7 [shape = 's32[1]{0}', space=sflag, size = 0x4, scoped, tag = 'scoped memory for tpu_custom_call.1']
    #allocation8 [shape = 'u8[32768]{0}', space=vmem, size = 0x8000, scoped, tag = 'input window, operand 3, single buffered']
    #allocation9 [shape = 'u8[32768]{0}', space=vmem, size = 0x8000, scoped, tag = 'output window, operand 0, single buffered']
    #allocation10 [shape = 'u8[8192]{0}', space=vmem, size = 0x2000, scoped, tag = 'output window, operand 1, single buffered']
    #allocation11 [shape = 's32[1]{0}', space=sflag, size = 0x4, scoped, tag = 'scoped memory for tpu_custom_call.1']
    #allocation12 [shape = 'u8[8192]{0}', space=vmem, size = 0x2000, scoped, tag = 'output window, operand 2, single buffered']
    %13 = vsyncpa [#allocation4], 0
    %14 = vsyncpa [#allocation7], 0
    %15 = vsyncpa [#allocation5], 0
    %16 = vsyncpa [#allocation11], 0
    // Predicated region
    $region2: #{tpu_custom_call.1} parent=1 // pred_check
      _
    $region3: #{tpu_custom_call.1} parent=1 // pred_check_branch
      %18 = sbr.rel (0) target = $region5
    $region4: #{tpu_custom_call.1} parent=1 // pred_region
      %s20 = ssub.s32 1024, 1024
      %21 = vsyncadd [#allocation4], %s20
      %s22 = sshll.u32 [#allocation3], 4
      %s23 = int_to_ptr.vmem [resolvable:$true] %s22
      %28 = dma.hbm_to_vmem [thread:$0]  %s0, 1024, %s23, [#allocation4], 128, 128, 8
    $region5: #{tpu_custom_call.1} parent=1 // pred_fallthru
      _
    // Predicated region
    $region6: #{tpu_custom_call.1} parent=1 // pred_check
      _
    $region7: #{tpu_custom_call.1} parent=1 // pred_check_branch
      %30 = sbr.rel (0) target = $region9
    $region8: #{tpu_custom_call.1} parent=1 // pred_region
      %s32 = ssub.s32 768, 768
      %33 = vsyncadd [#allocation7], %s32
      %s34 = sshll.u32 [#allocation6], 4
      %s35 = int_to_ptr.vmem [resolvable:$true] %s34
      %40 = dma.hbm_to_vmem [thread:$0]  %s1, 768, %s35, [#allocation7], 128, 128, 8
    $region9: #{tpu_custom_call.1} parent=1 // pred_fallthru
      _
    // Predicated region
    $region10: #{tpu_custom_call.1} parent=1 // pred_check
      _
    $region11: #{tpu_custom_call.1} parent=1 // pred_check_branch
      %42 = sbr.rel (0) target = $region13
    $region12: #{tpu_custom_call.1} parent=1 // pred_region
      _
    $region13: #{tpu_custom_call.1} parent=1 // pred_fallthru
      _
    // Predicated region
    $region14: #{tpu_custom_call.1} parent=1 // pred_check
      _
    $region15: #{tpu_custom_call.1} parent=1 // pred_check_branch
      %44 = sbr.rel (0) target = $region17
    $region16: #{tpu_custom_call.1} parent=1 // pred_region
      %s46 = ssub.s32 1024, 1024
      %47 = vsyncadd [#allocation7], %s46
      %s48 = sshll.u32 [#allocation8], 4
      %s49 = int_to_ptr.vmem [resolvable:$true] %s48
      %54 = dma.hbm_to_vmem [thread:$0]  %s3, 1024, %s49, [#allocation7], 128, 128, 8
    $region17: #{tpu_custom_call.1} parent=1 // pred_fallthru
      _
    // Predicated region
    $region18: #{tpu_custom_call.1} parent=1 // pred_check
      _
    $region19: #{tpu_custom_call.1} parent=1 // pred_check_branch
      %56 = sbr.rel (0) target = $region21
    $region20: #{tpu_custom_call.1} parent=1 // pred_region
      _
    $region21: #{tpu_custom_call.1} parent=1 // pred_fallthru
      _
    // Predicated region
    $region22: #{tpu_custom_call.1} parent=1 // pred_check
      _
    $region23: #{tpu_custom_call.1} parent=1 // pred_check_branch
      %58 = sbr.rel (0) target = $region25
    $region24: #{tpu_custom_call.1} parent=1 // pred_region
      %59 = dma.done [#allocation4], 1024
    $region25: #{tpu_custom_call.1} parent=1 // pred_fallthru
      _
    // Predicated region
    $region26: #{tpu_custom_call.1} parent=1 // pred_check
      _
    $region27: #{tpu_custom_call.1} parent=1 // pred_check_branch
      %61 = sbr.rel (0) target = $region29
    $region28: #{tpu_custom_call.1} parent=1 // pred_region
      %62 = dma.done [#allocation7], 768
    $region29: #{tpu_custom_call.1} parent=1 // pred_fallthru
      _
    // Predicated region
    $region30: #{tpu_custom_call.1} parent=1 // pred_check
      _
    $region31: #{tpu_custom_call.1} parent=1 // pred_check_branch
      %64 = sbr.rel (0) target = $region33
    $region32: #{tpu_custom_call.1} parent=1 // pred_region
      %65 = dma.done [#allocation7], 1024
    $region33: #{tpu_custom_call.1} parent=1 // pred_fallthru
      _
    %p66 = scmp.eq.s32.totalorder 0, 0
    // Predicated region
    $region34: #{tpu_custom_call.1} parent=1 // pred_check
      %p67 = pneg %p66
    $region35: #{tpu_custom_call.1} parent=1 // pred_check_branch
      %69 = sbr.rel (%p67) target = $region37
    $region36: #{tpu_custom_call.1} parent=1 // pred_region
      %vm70 = vcmask 261120
      %71 = vst.msk [vmem:[#allocation2] sm:$0xff] %vm70, 0.0
      %72 = vst.msk [vmem:[#allocation2 + $0x8] sm:$0xff] %vm70, 0.0
      %73 = vst.msk [vmem:[#allocation2 + $0x10] sm:$0xff] %vm70, 0.0
      %74 = vst.msk [vmem:[#allocation2 + $0x18] sm:$0xff] %vm70, 0.0
    $region37: #{tpu_custom_call.1} parent=1 // pred_fallthru
      _
    %v75 = vld [vmem:[#allocation6] sm:$0xff]
    %v76 = vld [vmem:[#allocation6 + $0x8] sm:$0xff]
    %v77 = vld [vmem:[#allocation6 + $0x10] sm:$0xff]
    %v78 = vld [vmem:[#allocation6 + $0x18] sm:$0xff]
    %v79 = vld [vmem:[#allocation6 + $0x20] sm:$0xff]
    %v80 = vld [vmem:[#allocation6 + $0x28] sm:$0xff]
    %v81 = vld [vmem:[%s2] sm:$0x1]
    %v82 = vld [vmem:[#allocation8] sm:$0xff]
    %v83 = vld [vmem:[#allocation8 + $0x8] sm:$0xff]
    %v84 = vld [vmem:[#allocation8 + $0x10] sm:$0xff]
    %v85 = vld [vmem:[#allocation8 + $0x18] sm:$0xff]
    %v86 = vld [vmem:[#allocation8 + $0x20] sm:$0xff]
    %v87 = vld [vmem:[#allocation8 + $0x28] sm:$0xff]
    %v88 = vld [vmem:[#allocation8 + $0x30] sm:$0xff]
    %v89 = vld [vmem:[#allocation8 + $0x38] sm:$0xff]
    %v90 = vld [vmem:[%s4] sm:$0x1]
    %v91 = vld [vmem:[#allocation2] sm:$0xff]
    %s92 = scalar_lea.vmem [#allocation2], 8
    %v93 = vld [vmem:[%s92] sm:$0xff]
    %s94 = scalar_lea.vmem [#allocation2], 16
    %v95 = vld [vmem:[%s94] sm:$0xff]
    %s96 = scalar_lea.vmem [#allocation2], 24
    %v97 = vld [vmem:[%s96] sm:$0xff]
    %v98 = vld [vmem:[#allocation3] sm:$0xff]
    %100 = vrot.lane.b32.xlu0 %v91, 16
    %v101 = vpop.permute.xlu0 %100
    %vm103 = vcmask 130048
    %v104 = vsel %vm103, %v98, %v101
    %v106 = vlaneseq
    %v107 = vshrl.u32 %v106, 7
    %v108 = vsub.s32 0, %v107
    %v109 = vrot.slane %v81, %v108
    %vm111 = vcmask 392192
    %v113 = vsel %vm111, %v104, 0
    %115 = vmatprep.subr.mxu0 0.0
    %116 = vmatpush1.msra.mxu0 %v75
    %117 = vmatprep.subr.mxu0 0.0
    %118 = vmatpush1.msra.mxu0 %v76
    %119 = vmatprep.subr.mxu0 0.0
    %120 = vmatpush1.msra.mxu0 %v77
    %121 = vmatprep.subr.mxu0 0.0
    %122 = vmatpush1.msra.mxu0 %v78
    %123 = vmatprep.subr.mxu0 0.0
    %124 = vmatpush1.msra.mxu0 %v79
    %125 = vmatprep.subr.mxu0 0.0
    %126 = vmatpush1.msra.mxu0 %v80
    %127 = vmatprep.subr.mxu0 0.0
    %128 = vmatpush1.msra.mxu0 0.0
    %129 = vmatprep.subr.mxu0 0.0
    %130 = vmatpush1.msra.mxu0 0.0
    %131 = vmatprep.subr.mxu0 0.0
    %132 = vmatpush1.msra.mxu0 0.0
    %133 = vmatprep.subr.mxu0 0.0
    %134 = vmatpush1.msra.mxu0 0.0
    %135 = vmatprep.subr.mxu0 0.0
    %136 = vmatpush1.msra.mxu0 0.0
    %137 = vmatprep.subr.mxu0 0.0
    %138 = vmatpush1.msra.mxu0 0.0
    %139 = vmatprep.subr.mxu0 0.0
    %140 = vmatpush1.msra.mxu0 0.0
    %141 = vmatprep.subr.mxu0 0.0
    %142 = vmatpush1.msra.mxu0 0.0
    %143 = vmatprep.subr.mxu0 0.0
    %144 = vmatpush1.msra.mxu0 0.0
    %145 = vmatprep.subr.mxu0 0.0
    %146 = vmatpush1.msra.mxu0 0.0
    %147 = vmatprep.subr.mxu0 0.0
    %148 = vmatpush1.msra.mxu0 0.0
    %149 = vmatprep.subr.mxu0 0.0
    %150 = vmatpush1.msra.mxu0 0.0
    %151 = vmatprep.subr.mxu0 0.0
    %152 = vmatpush1.msra.mxu0 0.0
    %153 = vmatprep.subr.mxu0 0.0
    %154 = vmatpush1.msra.mxu0 0.0
    %155 = vmatprep.subr.mxu0 0.0
    %156 = vmatpush1.msra.mxu0 0.0
    %157 = vmatprep.subr.mxu0 0.0
    %158 = vmatpush1.msra.mxu0 0.0
    %159 = vmatprep.subr.mxu0 0.0
    %160 = vmatpush1.msra.mxu0 0.0
    %161 = vmatprep.subr.mxu0 0.0
    %162 = vmatpush1.msra.mxu0 0.0
    %163 = vmatprep.subr.mxu0 0.0
    %164 = vmatpush1.msra.mxu0 0.0
    %165 = vmatprep.subr.mxu0 0.0
    %166 = vmatpush1.msra.mxu0 0.0
    %167 = vmatprep.subr.mxu0 0.0
    %168 = vmatpush1.msra.mxu0 0.0
    %169 = vmatprep.subr.mxu0 0.0
    %170 = vmatpush1.msra.mxu0 0.0
    %171 = vmatprep.subr.mxu0 0.0
    %172 = vmatpush1.msra.mxu0 0.0
    %173 = vmatprep.subr.mxu0 0.0
    %174 = vmatpush1.msra.mxu0 0.0
    %175 = vmatprep.subr.mxu0 0.0
    %176 = vmatpush1.msra.mxu0 0.0
    %177 = vmatprep.subr.mxu0 0.0
    %178 = vmatpush1.msra.mxu0 0.0
    %179 = vmatprep.mubr.f32.mxu0 0.0
    %180 = vmatmul.mubr.f32.gmra.mrb[0].mxu0 %v113
    %v181 = vpop.f32.mrb[0].mxu0
    %v182 = vadd.f32 %v109, %v181
    %v183 = vpop.f32.mrb[0].mxu0
    %184 = vdwg.mxu0
    %v185 = vxor.u32 %v182, 2147483648
    %v186 = vmul.f32 %v185, 1.442695
    %v187 = vpow.pop %v186
    %v188 = vadd.f32 %v187, 1.0
    %v189 = vrcp.pop %v188
    %v190 = vmul.f32 1.0, %v189
    %v191 = vtanh.pop %v182
    %193 = vrot.lane.b32.xlu0 %v93, 32
    %v194 = vpop.permute.xlu0 %193
    %v196 = vmul.f32 %v190, %v194
    %198 = vrot.lane.b32.xlu0 %v191, 64
    %v199 = vpop.permute.xlu0 %198
    %v201 = vmul.f32 %v190, %v199
    %203 = vrot.lane.b32.xlu0 %v201, 32
    %v204 = vpop.permute.xlu0 %203
    %v206 = vadd.f32 %v196, %v204
    %v207 = vtanh.pop %v206
    %209 = vrot.lane.b32.xlu0 %v207, 64
    %v210 = vpop.permute.xlu0 %209
    %v212 = vmul.f32 %v190, %v210
    %214 = vrot.lane.b32.xlu0 %v212, 32
    %v215 = vpop.permute.xlu0 %214
    %218 = vrot.lane.b32.xlu0 %v95, 32
    %v219 = vpop.permute.xlu0 %218
    %vm221 = vcmask 261120
    %v222 = vsel %vm221, %v215, %v219
    %v224 = vlaneseq
    %v225 = vshrl.u32 %v224, 7
    %v226 = vsub.s32 0, %v225
    %v227 = vrot.slane %v90, %v226
    %vm229 = vcmask 523264
    %v231 = vsel %vm229, %v222, 0
    %233 = vmatprep.subr.mxu0 0.0
    %234 = vmatpush1.msra.mxu0 %v82
    %235 = vmatprep.subr.mxu0 0.0
    %236 = vmatpush1.msra.mxu0 %v83
    %237 = vmatprep.subr.mxu0 0.0
    %238 = vmatpush1.msra.mxu0 %v84
    %239 = vmatprep.subr.mxu0 0.0
    %240 = vmatpush1.msra.mxu0 %v85
    %241 = vmatprep.subr.mxu0 0.0
    %242 = vmatpush1.msra.mxu0 %v86
    %243 = vmatprep.subr.mxu0 0.0
    %244 = vmatpush1.msra.mxu0 %v87
    %245 = vmatprep.subr.mxu0 0.0
    %246 = vmatpush1.msra.mxu0 %v88
    %247 = vmatprep.subr.mxu0 0.0
    %248 = vmatpush1.msra.mxu0 %v89
    %249 = vmatprep.subr.mxu0 0.0
    %250 = vmatpush1.msra.mxu0 0.0
    %251 = vmatprep.subr.mxu0 0.0
    %252 = vmatpush1.msra.mxu0 0.0
    %253 = vmatprep.subr.mxu0 0.0
    %254 = vmatpush1.msra.mxu0 0.0
    %255 = vmatprep.subr.mxu0 0.0
    %256 = vmatpush1.msra.mxu0 0.0
    %257 = vmatprep.subr.mxu0 0.0
    %258 = vmatpush1.msra.mxu0 0.0
    %259 = vmatprep.subr.mxu0 0.0
    %260 = vmatpush1.msra.mxu0 0.0
    %261 = vmatprep.subr.mxu0 0.0
    %262 = vmatpush1.msra.mxu0 0.0
    %263 = vmatprep.subr.mxu0 0.0
    %264 = vmatpush1.msra.mxu0 0.0
    %265 = vmatprep.subr.mxu0 0.0
    %266 = vmatpush1.msra.mxu0 0.0
    %267 = vmatprep.subr.mxu0 0.0
    %268 = vmatpush1.msra.mxu0 0.0
    %269 = vmatprep.subr.mxu0 0.0
    %270 = vmatpush1.msra.mxu0 0.0
    %271 = vmatprep.subr.mxu0 0.0
    %272 = vmatpush1.msra.mxu0 0.0
    %273 = vmatprep.subr.mxu0 0.0
    %274 = vmatpush1.msra.mxu0 0.0
    %275 = vmatprep.subr.mxu0 0.0
    %276 = vmatpush1.msra.mxu0 0.0
    %277 = vmatprep.subr.mxu0 0.0
    %278 = vmatpush1.msra.mxu0 0.0
    %279 = vmatprep.subr.mxu0 0.0
    %280 = vmatpush1.msra.mxu0 0.0
    %281 = vmatprep.subr.mxu0 0.0
    %282 = vmatpush1.msra.mxu0 0.0
    %283 = vmatprep.subr.mxu0 0.0
    %284 = vmatpush1.msra.mxu0 0.0
    %285 = vmatprep.subr.mxu0 0.0
    %286 = vmatpush1.msra.mxu0 0.0
    %287 = vmatprep.subr.mxu0 0.0
    %288 = vmatpush1.msra.mxu0 0.0
    %289 = vmatprep.subr.mxu0 0.0
    %290 = vmatpush1.msra.mxu0 0.0
    %291 = vmatprep.subr.mxu0 0.0
    %292 = vmatpush1.msra.mxu0 0.0
    %293 = vmatprep.subr.mxu0 0.0
    %294 = vmatpush1.msra.mxu0 0.0
    %295 = vmatprep.subr.mxu0 0.0
    %296 = vmatpush1.msra.mxu0 0.0
    %297 = vmatprep.mubr.f32.mxu0 0.0
    %298 = vmatmul.mubr.f32.gmra.mrb[0].mxu0 %v231
    %v299 = vpop.f32.mrb[0].mxu0
    %v300 = vadd.f32 %v227, %v299
    %v301 = vpop.f32.mrb[0].mxu0
    %302 = vdwg.mxu0
    %v303 = vxor.u32 %v300, 2147483648
    %v304 = vmul.f32 %v303, 1.442695
    %v305 = vpow.pop %v304
    %v306 = vadd.f32 %v305, 1.0
    %v307 = vrcp.pop %v306
    %v308 = vmul.f32 1.0, %v307
    %v309 = vtanh.pop %v300
    %311 = vrot.lane.b32.xlu0 %v97, 32
    %v312 = vpop.permute.xlu0 %311
    %v314 = vmul.f32 %v308, %v312
    %316 = vrot.lane.b32.xlu0 %v309, 64
    %v317 = vpop.permute.xlu0 %316
    %v319 = vmul.f32 %v308, %v317
    %321 = vrot.lane.b32.xlu0 %v319, 32
    %v322 = vpop.permute.xlu0 %321
    %v324 = vadd.f32 %v314, %v322
    %v325 = vtanh.pop %v324
    %327 = vrot.lane.b32.xlu0 %v325, 64
    %v328 = vpop.permute.xlu0 %327
    %v330 = vmul.f32 %v308, %v328
    %332 = vrot.lane.b32.xlu0 %v330, 32
    %v333 = vpop.permute.xlu0 %332
    %335 = vst.msk [vmem:[#allocation9] sm:$0xff] %vm221, %v333
    %s336 = scalar_lea.vmem [#allocation3], 8
    %v337 = vld [vmem:[%s336] sm:$0xff]
    %338 = vrot.lane.b32.xlu0 %v212, 48
    %v339 = vpop.permute.xlu0 %338
    %v341 = vsel %vm103, %v337, %v339
    %v343 = vsel %vm111, %v341, 0
    %345 = vmatprep.subr.mxu0 0.0
    %346 = vmatpush1.msra.mxu0 %v75
    %347 = vmatprep.subr.mxu0 0.0
    %348 = vmatpush1.msra.mxu0 %v76
    %349 = vmatprep.subr.mxu0 0.0
    %350 = vmatpush1.msra.mxu0 %v77
    %351 = vmatprep.subr.mxu0 0.0
    %352 = vmatpush1.msra.mxu0 %v78
    %353 = vmatprep.subr.mxu0 0.0
    %354 = vmatpush1.msra.mxu0 %v79
    %355 = vmatprep.subr.mxu0 0.0
    %356 = vmatpush1.msra.mxu0 %v80
    %357 = vmatprep.subr.mxu0 0.0
    %358 = vmatpush1.msra.mxu0 0.0
    %359 = vmatprep.subr.mxu0 0.0
    %360 = vmatpush1.msra.mxu0 0.0
    %361 = vmatprep.subr.mxu0 0.0
    %362 = vmatpush1.msra.mxu0 0.0
    %363 = vmatprep.subr.mxu0 0.0
    %364 = vmatpush1.msra.mxu0 0.0
    %365 = vmatprep.subr.mxu0 0.0
    %366 = vmatpush1.msra.mxu0 0.0
    %367 = vmatprep.subr.mxu0 0.0
    %368 = vmatpush1.msra.mxu0 0.0
    %369 = vmatprep.subr.mxu0 0.0
    %370 = vmatpush1.msra.mxu0 0.0
    %371 = vmatprep.subr.mxu0 0.0
    %372 = vmatpush1.msra.mxu0 0.0
    %373 = vmatprep.subr.mxu0 0.0
    %374 = vmatpush1.msra.mxu0 0.0
    %375 = vmatprep.subr.mxu0 0.0
    %376 = vmatpush1.msra.mxu0 0.0
    %377 = vmatprep.subr.mxu0 0.0
    %378 = vmatpush1.msra.mxu0 0.0
    %379 = vmatprep.subr.mxu0 0.0
    %380 = vmatpush1.msra.mxu0 0.0
    %381 = vmatprep.subr.mxu0 0.0
    %382 = vmatpush1.msra.mxu0 0.0
    %383 = vmatprep.subr.mxu0 0.0
    %384 = vmatpush1.msra.mxu0 0.0
    %385 = vmatprep.subr.mxu0 0.0
    %386 = vmatpush1.msra.mxu0 0.0
    %387 = vmatprep.subr.mxu0 0.0
    %388 = vmatpush1.msra.mxu0 0.0
    %389 = vmatprep.subr.mxu0 0.0
    %390 = vmatpush1.msra.mxu0 0.0
    %391 = vmatprep.subr.mxu0 0.0
    %392 = vmatpush1.msra.mxu0 0.0
    %393 = vmatprep.subr.mxu0 0.0
    %394 = vmatpush1.msra.mxu0 0.0
    %395 = vmatprep.subr.mxu0 0.0
    %396 = vmatpush1.msra.mxu0 0.0
    %397 = vmatprep.subr.mxu0 0.0
    %398 = vmatpush1.msra.mxu0 0.0
    %399 = vmatprep.subr.mxu0 0.0
    %400 = vmatpush1.msra.mxu0 0.0
    %401 = vmatprep.subr.mxu0 0.0
    %402 = vmatpush1.msra.mxu0 0.0
    %403 = vmatprep.subr.mxu0 0.0
    %404 = vmatpush1.msra.mxu0 0.0
    %405 = vmatprep.subr.mxu0 0.0
    %406 = vmatpush1.msra.mxu0 0.0
    %407 = vmatprep.subr.mxu0 0.0
    %408 = vmatpush1.msra.mxu0 0.0
    %409 = vmatprep.mubr.f32.mxu0 0.0
    %410 = vmatmul.mubr.f32.gmra.mrb[0].mxu0 %v343
    %v411 = vpop.f32.mrb[0].mxu0
    %v412 = vadd.f32 %v109, %v411
    %v413 = vpop.f32.mrb[0].mxu0
    %414 = vdwg.mxu0
    %v415 = vxor.u32 %v412, 2147483648
    %v416 = vmul.f32 %v415, 1.442695
    %v417 = vpow.pop %v416
    %v418 = vadd.f32 %v417, 1.0
    %v419 = vrcp.pop %v418
    %v420 = vmul.f32 1.0, %v419
    %v421 = vtanh.pop %v412
    %v422 = vmul.f32 %v420, %v206
    %424 = vrot.lane.b32.xlu0 %v421, 64
    %v425 = vpop.permute.xlu0 %424
    %v427 = vmul.f32 %v420, %v425
    %429 = vrot.lane.b32.xlu0 %v427, 32
    %v430 = vpop.permute.xlu0 %429
    %v432 = vadd.f32 %v422, %v430
    %v433 = vtanh.pop %v432
    %435 = vrot.lane.b32.xlu0 %v433, 64
    %v436 = vpop.permute.xlu0 %435
    %v438 = vmul.f32 %v420, %v436
    %440 = vrot.lane.b32.xlu0 %v438, 32
    %v441 = vpop.permute.xlu0 %440
    %443 = vrot.lane.b32.xlu0 %v330, 64
    %v444 = vpop.permute.xlu0 %443
    %v446 = vsel %vm221, %v441, %v444
    %v448 = vsel %vm229, %v446, 0
    %450 = vmatprep.subr.mxu0 0.0
    %451 = vmatpush1.msra.mxu0 %v82
    %452 = vmatprep.subr.mxu0 0.0
    %453 = vmatpush1.msra.mxu0 %v83
    %454 = vmatprep.subr.mxu0 0.0
    %455 = vmatpush1.msra.mxu0 %v84
    %456 = vmatprep.subr.mxu0 0.0
    %457 = vmatpush1.msra.mxu0 %v85
    %458 = vmatprep.subr.mxu0 0.0
    %459 = vmatpush1.msra.mxu0 %v86
    %460 = vmatprep.subr.mxu0 0.0
    %461 = vmatpush1.msra.mxu0 %v87
    %462 = vmatprep.subr.mxu0 0.0
    %463 = vmatpush1.msra.mxu0 %v88
    %464 = vmatprep.subr.mxu0 0.0
    %465 = vmatpush1.msra.mxu0 %v89
    %466 = vmatprep.subr.mxu0 0.0
    %467 = vmatpush1.msra.mxu0 0.0
    %468 = vmatprep.subr.mxu0 0.0
    %469 = vmatpush1.msra.mxu0 0.0
    %470 = vmatprep.subr.mxu0 0.0
    %471 = vmatpush1.msra.mxu0 0.0
    %472 = vmatprep.subr.mxu0 0.0
    %473 = vmatpush1.msra.mxu0 0.0
    %474 = vmatprep.subr.mxu0 0.0
    %475 = vmatpush1.msra.mxu0 0.0
    %476 = vmatprep.subr.mxu0 0.0
    %477 = vmatpush1.msra.mxu0 0.0
    %478 = vmatprep.subr.mxu0 0.0
    %479 = vmatpush1.msra.mxu0 0.0
    %480 = vmatprep.subr.mxu0 0.0
    %481 = vmatpush1.msra.mxu0 0.0
    %482 = vmatprep.subr.mxu0 0.0
    %483 = vmatpush1.msra.mxu0 0.0
    %484 = vmatprep.subr.mxu0 0.0
    %485 = vmatpush1.msra.mxu0 0.0
    %486 = vmatprep.subr.mxu0 0.0
    %487 = vmatpush1.msra.mxu0 0.0
    %488 = vmatprep.subr.mxu0 0.0
    %489 = vmatpush1.msra.mxu0 0.0
    %490 = vmatprep.subr.mxu0 0.0
    %491 = vmatpush1.msra.mxu0 0.0
    %492 = vmatprep.subr.mxu0 0.0
    %493 = vmatpush1.msra.mxu0 0.0
    %494 = vmatprep.subr.mxu0 0.0
    %495 = vmatpush1.msra.mxu0 0.0
    %496 = vmatprep.subr.mxu0 0.0
    %497 = vmatpush1.msra.mxu0 0.0
    %498 = vmatprep.subr.mxu0 0.0
    %499 = vmatpush1.msra.mxu0 0.0
    %500 = vmatprep.subr.mxu0 0.0
    %501 = vmatpush1.msra.mxu0 0.0
    %502 = vmatprep.subr.mxu0 0.0
    %503 = vmatpush1.msra.mxu0 0.0
    %504 = vmatprep.subr.mxu0 0.0
    %505 = vmatpush1.msra.mxu0 0.0
    %506 = vmatprep.subr.mxu0 0.0
    %507 = vmatpush1.msra.mxu0 0.0
    %508 = vmatprep.subr.mxu0 0.0
    %509 = vmatpush1.msra.mxu0 0.0
    %510 = vmatprep.subr.mxu0 0.0
    %511 = vmatpush1.msra.mxu0 0.0
    %512 = vmatprep.subr.mxu0 0.0
    %513 = vmatpush1.msra.mxu0 0.0
    %514 = vmatprep.mubr.f32.mxu0 0.0
    %515 = vmatmul.mubr.f32.gmra.mrb[0].mxu0 %v448
    %v516 = vpop.f32.mrb[0].mxu0
    %v517 = vadd.f32 %v227, %v516
    %v518 = vpop.f32.mrb[0].mxu0
    %519 = vdwg.mxu0
    %v520 = vxor.u32 %v517, 2147483648
    %v521 = vmul.f32 %v520, 1.442695
    %v522 = vpow.pop %v521
    %v523 = vadd.f32 %v522, 1.0
    %v524 = vrcp.pop %v523
    %v525 = vmul.f32 1.0, %v524
    %v526 = vtanh.pop %v517
    %v527 = vmul.f32 %v525, %v324
    %529 = vrot.lane.b32.xlu0 %v526, 64
    %v530 = vpop.permute.xlu0 %529
    %v532 = vmul.f32 %v525, %v530
    %534 = vrot.lane.b32.xlu0 %v532, 32
    %v535 = vpop.permute.xlu0 %534
    %v537 = vadd.f32 %v527, %v535
    %v538 = vtanh.pop %v537
    %540 = vrot.lane.b32.xlu0 %v538, 64
    %v541 = vpop.permute.xlu0 %540
    %v543 = vmul.f32 %v525, %v541
    %545 = vrot.lane.b32.xlu0 %v543, 32
    %v546 = vpop.permute.xlu0 %545
    %s548 = scalar_lea.vmem [#allocation9], 8
    %549 = vst.msk [vmem:[%s548] sm:$0xff] %vm221, %v546
    %s550 = scalar_lea.vmem [#allocation3], 16
    %v551 = vld [vmem:[%s550] sm:$0xff]
    %552 = vrot.lane.b32.xlu0 %v438, 48
    %v553 = vpop.permute.xlu0 %552
    %v555 = vsel %vm103, %v551, %v553
    %v557 = vsel %vm111, %v555, 0
    %559 = vmatprep.subr.mxu0 0.0
    %560 = vmatpush1.msra.mxu0 %v75
    %561 = vmatprep.subr.mxu0 0.0
    %562 = vmatpush1.msra.mxu0 %v76
    %563 = vmatprep.subr.mxu0 0.0
    %564 = vmatpush1.msra.mxu0 %v77
    %565 = vmatprep.subr.mxu0 0.0
    %566 = vmatpush1.msra.mxu0 %v78
    %567 = vmatprep.subr.mxu0 0.0
    %568 = vmatpush1.msra.mxu0 %v79
    %569 = vmatprep.subr.mxu0 0.0
    %570 = vmatpush1.msra.mxu0 %v80
    %571 = vmatprep.subr.mxu0 0.0
    %572 = vmatpush1.msra.mxu0 0.0
    %573 = vmatprep.subr.mxu0 0.0
    %574 = vmatpush1.msra.mxu0 0.0
    %575 = vmatprep.subr.mxu0 0.0
    %576 = vmatpush1.msra.mxu0 0.0
    %577 = vmatprep.subr.mxu0 0.0
    %578 = vmatpush1.msra.mxu0 0.0
    %579 = vmatprep.subr.mxu0 0.0
    %580 = vmatpush1.msra.mxu0 0.0
    %581 = vmatprep.subr.mxu0 0.0
    %582 = vmatpush1.msra.mxu0 0.0
    %583 = vmatprep.subr.mxu0 0.0
    %584 = vmatpush1.msra.mxu0 0.0
    %585 = vmatprep.subr.mxu0 0.0
    %586 = vmatpush1.msra.mxu0 0.0
    %587 = vmatprep.subr.mxu0 0.0
    %588 = vmatpush1.msra.mxu0 0.0
    %589 = vmatprep.subr.mxu0 0.0
    %590 = vmatpush1.msra.mxu0 0.0
    %591 = vmatprep.subr.mxu0 0.0
    %592 = vmatpush1.msra.mxu0 0.0
    %593 = vmatprep.subr.mxu0 0.0
    %594 = vmatpush1.msra.mxu0 0.0
    %595 = vmatprep.subr.mxu0 0.0
    %596 = vmatpush1.msra.mxu0 0.0
    %597 = vmatprep.subr.mxu0 0.0
    %598 = vmatpush1.msra.mxu0 0.0
    %599 = vmatprep.subr.mxu0 0.0
    %600 = vmatpush1.msra.mxu0 0.0
    %601 = vmatprep.subr.mxu0 0.0
    %602 = vmatpush1.msra.mxu0 0.0
    %603 = vmatprep.subr.mxu0 0.0
    %604 = vmatpush1.msra.mxu0 0.0
    %605 = vmatprep.subr.mxu0 0.0
    %606 = vmatpush1.msra.mxu0 0.0
    %607 = vmatprep.subr.mxu0 0.0
    %608 = vmatpush1.msra.mxu0 0.0
    %609 = vmatprep.subr.mxu0 0.0
    %610 = vmatpush1.msra.mxu0 0.0
    %611 = vmatprep.subr.mxu0 0.0
    %612 = vmatpush1.msra.mxu0 0.0
    %613 = vmatprep.subr.mxu0 0.0
    %614 = vmatpush1.msra.mxu0 0.0
    %615 = vmatprep.subr.mxu0 0.0
    %616 = vmatpush1.msra.mxu0 0.0
    %617 = vmatprep.subr.mxu0 0.0
    %618 = vmatpush1.msra.mxu0 0.0
    %619 = vmatprep.subr.mxu0 0.0
    %620 = vmatpush1.msra.mxu0 0.0
    %621 = vmatprep.subr.mxu0 0.0
    %622 = vmatpush1.msra.mxu0 0.0
    %623 = vmatprep.mubr.f32.mxu0 0.0
    %624 = vmatmul.mubr.f32.gmra.mrb[0].mxu0 %v557
    %v625 = vpop.f32.mrb[0].mxu0
    %v626 = vadd.f32 %v109, %v625
    %v627 = vpop.f32.mrb[0].mxu0
    %628 = vdwg.mxu0
    %v629 = vxor.u32 %v626, 2147483648
    %v630 = vmul.f32 %v629, 1.442695
    %v631 = vpow.pop %v630
    %v632 = vadd.f32 %v631, 1.0
    %v633 = vrcp.pop %v632
    %v634 = vmul.f32 1.0, %v633
    %v635 = vtanh.pop %v626
    %v636 = vmul.f32 %v634, %v432
    %638 = vrot.lane.b32.xlu0 %v635, 64
    %v639 = vpop.permute.xlu0 %638
    %v641 = vmul.f32 %v634, %v639
    %643 = vrot.lane.b32.xlu0 %v641, 32
    %v644 = vpop.permute.xlu0 %643
    %v646 = vadd.f32 %v636, %v644
    %v647 = vtanh.pop %v646
    %649 = vrot.lane.b32.xlu0 %v647, 64
    %v650 = vpop.permute.xlu0 %649
    %v652 = vmul.f32 %v634, %v650
    %654 = vrot.lane.b32.xlu0 %v652, 32
    %v655 = vpop.permute.xlu0 %654
    %657 = vrot.lane.b32.xlu0 %v543, 64
    %v658 = vpop.permute.xlu0 %657
    %v660 = vsel %vm221, %v655, %v658
    %v662 = vsel %vm229, %v660, 0
    %664 = vmatprep.subr.mxu0 0.0
    %665 = vmatpush1.msra.mxu0 %v82
    %666 = vmatprep.subr.mxu0 0.0
    %667 = vmatpush1.msra.mxu0 %v83
    %668 = vmatprep.subr.mxu0 0.0
    %669 = vmatpush1.msra.mxu0 %v84
    %670 = vmatprep.subr.mxu0 0.0
    %671 = vmatpush1.msra.mxu0 %v85
    %672 = vmatprep.subr.mxu0 0.0
    %673 = vmatpush1.msra.mxu0 %v86
    %674 = vmatprep.subr.mxu0 0.0
    %675 = vmatpush1.msra.mxu0 %v87
    %676 = vmatprep.subr.mxu0 0.0
    %677 = vmatpush1.msra.mxu0 %v88
    %678 = vmatprep.subr.mxu0 0.0
    %679 = vmatpush1.msra.mxu0 %v89
    %680 = vmatprep.subr.mxu0 0.0
    %681 = vmatpush1.msra.mxu0 0.0
    %682 = vmatprep.subr.mxu0 0.0
    %683 = vmatpush1.msra.mxu0 0.0
    %684 = vmatprep.subr.mxu0 0.0
    %685 = vmatpush1.msra.mxu0 0.0
    %686 = vmatprep.subr.mxu0 0.0
    %687 = vmatpush1.msra.mxu0 0.0
    %688 = vmatprep.subr.mxu0 0.0
    %689 = vmatpush1.msra.mxu0 0.0
    %690 = vmatprep.subr.mxu0 0.0
    %691 = vmatpush1.msra.mxu0 0.0
    %692 = vmatprep.subr.mxu0 0.0
    %693 = vmatpush1.msra.mxu0 0.0
    %694 = vmatprep.subr.mxu0 0.0
    %695 = vmatpush1.msra.mxu0 0.0
    %696 = vmatprep.subr.mxu0 0.0
    %697 = vmatpush1.msra.mxu0 0.0
    %698 = vmatprep.subr.mxu0 0.0
    %699 = vmatpush1.msra.mxu0 0.0
    %700 = vmatprep.subr.mxu0 0.0
    %701 = vmatpush1.msra.mxu0 0.0
    %702 = vmatprep.subr.mxu0 0.0
    %703 = vmatpush1.msra.mxu0 0.0
    %704 = vmatprep.subr.mxu0 0.0
    %705 = vmatpush1.msra.mxu0 0.0
    %706 = vmatprep.subr.mxu0 0.0
    %707 = vmatpush1.msra.mxu0 0.0
    %708 = vmatprep.subr.mxu0 0.0
    %709 = vmatpush1.msra.mxu0 0.0
    %710 = vmatprep.subr.mxu0 0.0
    %711 = vmatpush1.msra.mxu0 0.0
    %712 = vmatprep.subr.mxu0 0.0
    %713 = vmatpush1.msra.mxu0 0.0
    %714 = vmatprep.subr.mxu0 0.0
    %715 = vmatpush1.msra.mxu0 0.0
    %716 = vmatprep.subr.mxu0 0.0
    %717 = vmatpush1.msra.mxu0 0.0
    %718 = vmatprep.subr.mxu0 0.0
    %719 = vmatpush1.msra.mxu0 0.0
    %720 = vmatprep.subr.mxu0 0.0
    %721 = vmatpush1.msra.mxu0 0.0
    %722 = vmatprep.subr.mxu0 0.0
    %723 = vmatpush1.msra.mxu0 0.0
    %724 = vmatprep.subr.mxu0 0.0
    %725 = vmatpush1.msra.mxu0 0.0
    %726 = vmatprep.subr.mxu0 0.0
    %727 = vmatpush1.msra.mxu0 0.0
    %728 = vmatprep.mubr.f32.mxu0 0.0
    %729 = vmatmul.mubr.f32.gmra.mrb[0].mxu0 %v662
    %v730 = vpop.f32.mrb[0].mxu0
    %v731 = vadd.f32 %v227, %v730
    %v732 = vpop.f32.mrb[0].mxu0
    %733 = vdwg.mxu0
    %v734 = vxor.u32 %v731, 2147483648
    %v735 = vmul.f32 %v734, 1.442695
    %v736 = vpow.pop %v735
    %v737 = vadd.f32 %v736, 1.0
    %v738 = vrcp.pop %v737
    %v739 = vmul.f32 1.0, %v738
    %v740 = vtanh.pop %v731
    %v741 = vmul.f32 %v739, %v537
    %743 = vrot.lane.b32.xlu0 %v740, 64
    %v744 = vpop.permute.xlu0 %743
    %v746 = vmul.f32 %v739, %v744
    %748 = vrot.lane.b32.xlu0 %v746, 32
    %v749 = vpop.permute.xlu0 %748
    %v751 = vadd.f32 %v741, %v749
    %v752 = vtanh.pop %v751
    %754 = vrot.lane.b32.xlu0 %v752, 64
    %v755 = vpop.permute.xlu0 %754
    %v757 = vmul.f32 %v739, %v755
    %759 = vrot.lane.b32.xlu0 %v757, 32
    %v760 = vpop.permute.xlu0 %759
    %s762 = scalar_lea.vmem [#allocation9], 16
    %763 = vst.msk [vmem:[%s762] sm:$0xff] %vm221, %v760
    %s764 = scalar_lea.vmem [#allocation3], 24
    %v765 = vld [vmem:[%s764] sm:$0xff]
    %766 = vrot.lane.b32.xlu0 %v652, 48
    %v767 = vpop.permute.xlu0 %766
    %v769 = vsel %vm103, %v765, %v767
    %v771 = vsel %vm111, %v769, 0
    %773 = vmatprep.subr.mxu0 0.0
    %774 = vmatpush1.msra.mxu0 %v75
    %775 = vmatprep.subr.mxu0 0.0
    %776 = vmatpush1.msra.mxu0 %v76
    %777 = vmatprep.subr.mxu0 0.0
    %778 = vmatpush1.msra.mxu0 %v77
    %779 = vmatprep.subr.mxu0 0.0
    %780 = vmatpush1.msra.mxu0 %v78
    %781 = vmatprep.subr.mxu0 0.0
    %782 = vmatpush1.msra.mxu0 %v79
    %783 = vmatprep.subr.mxu0 0.0
    %784 = vmatpush1.msra.mxu0 %v80
    %785 = vmatprep.subr.mxu0 0.0
    %786 = vmatpush1.msra.mxu0 0.0
    %787 = vmatprep.subr.mxu0 0.0
    %788 = vmatpush1.msra.mxu0 0.0
    %789 = vmatprep.subr.mxu0 0.0
    %790 = vmatpush1.msra.mxu0 0.0
    %791 = vmatprep.subr.mxu0 0.0
    %792 = vmatpush1.msra.mxu0 0.0
    %793 = vmatprep.subr.mxu0 0.0
    %794 = vmatpush1.msra.mxu0 0.0
    %795 = vmatprep.subr.mxu0 0.0
    %796 = vmatpush1.msra.mxu0 0.0
    %797 = vmatprep.subr.mxu0 0.0
    %798 = vmatpush1.msra.mxu0 0.0
    %799 = vmatprep.subr.mxu0 0.0
    %800 = vmatpush1.msra.mxu0 0.0
    %801 = vmatprep.subr.mxu0 0.0
    %802 = vmatpush1.msra.mxu0 0.0
    %803 = vmatprep.subr.mxu0 0.0
    %804 = vmatpush1.msra.mxu0 0.0
    %805 = vmatprep.subr.mxu0 0.0
    %806 = vmatpush1.msra.mxu0 0.0
    %807 = vmatprep.subr.mxu0 0.0
    %808 = vmatpush1.msra.mxu0 0.0
    %809 = vmatprep.subr.mxu0 0.0
    %810 = vmatpush1.msra.mxu0 0.0
    %811 = vmatprep.subr.mxu0 0.0
    %812 = vmatpush1.msra.mxu0 0.0
    %813 = vmatprep.subr.mxu0 0.0
    %814 = vmatpush1.msra.mxu0 0.0
    %815 = vmatprep.subr.mxu0 0.0
    %816 = vmatpush1.msra.mxu0 0.0
    %817 = vmatprep.subr.mxu0 0.0
    %818 = vmatpush1.msra.mxu0 0.0
    %819 = vmatprep.subr.mxu0 0.0
    %820 = vmatpush1.msra.mxu0 0.0
    %821 = vmatprep.subr.mxu0 0.0
    %822 = vmatpush1.msra.mxu0 0.0
    %823 = vmatprep.subr.mxu0 0.0
    %824 = vmatpush1.msra.mxu0 0.0
    %825 = vmatprep.subr.mxu0 0.0
    %826 = vmatpush1.msra.mxu0 0.0
    %827 = vmatprep.subr.mxu0 0.0
    %828 = vmatpush1.msra.mxu0 0.0
    %829 = vmatprep.subr.mxu0 0.0
    %830 = vmatpush1.msra.mxu0 0.0
    %831 = vmatprep.subr.mxu0 0.0
    %832 = vmatpush1.msra.mxu0 0.0
    %833 = vmatprep.subr.mxu0 0.0
    %834 = vmatpush1.msra.mxu0 0.0
    %835 = vmatprep.subr.mxu0 0.0
    %836 = vmatpush1.msra.mxu0 0.0
    %837 = vmatprep.mubr.f32.mxu0 0.0
    %838 = vmatmul.mubr.f32.gmra.mrb[0].mxu0 %v771
    %v839 = vpop.f32.mrb[0].mxu0
    %v840 = vadd.f32 %v109, %v839
    %v841 = vpop.f32.mrb[0].mxu0
    %842 = vdwg.mxu0
    %v843 = vxor.u32 %v840, 2147483648
    %v844 = vmul.f32 %v843, 1.442695
    %v845 = vpow.pop %v844
    %v846 = vadd.f32 %v845, 1.0
    %v847 = vrcp.pop %v846
    %v848 = vmul.f32 1.0, %v847
    %v849 = vtanh.pop %v840
    %v850 = vmul.f32 %v848, %v646
    %852 = vrot.lane.b32.xlu0 %v849, 64
    %v853 = vpop.permute.xlu0 %852
    %v855 = vmul.f32 %v848, %v853
    %857 = vrot.lane.b32.xlu0 %v855, 32
    %v858 = vpop.permute.xlu0 %857
    %v860 = vadd.f32 %v850, %v858
    %v861 = vtanh.pop %v860
    %863 = vrot.lane.b32.xlu0 %v861, 64
    %v864 = vpop.permute.xlu0 %863
    %v866 = vmul.f32 %v848, %v864
    %868 = vrot.lane.b32.xlu0 %v866, 32
    %v869 = vpop.permute.xlu0 %868
    %871 = vrot.lane.b32.xlu0 %v757, 64
    %v872 = vpop.permute.xlu0 %871
    %v874 = vsel %vm221, %v869, %v872
    %v876 = vsel %vm229, %v874, 0
    %878 = vmatprep.subr.mxu0 0.0
    %879 = vmatpush1.msra.mxu0 %v82
    %880 = vmatprep.subr.mxu0 0.0
    %881 = vmatpush1.msra.mxu0 %v83
    %882 = vmatprep.subr.mxu0 0.0
    %883 = vmatpush1.msra.mxu0 %v84
    %884 = vmatprep.subr.mxu0 0.0
    %885 = vmatpush1.msra.mxu0 %v85
    %886 = vmatprep.subr.mxu0 0.0
    %887 = vmatpush1.msra.mxu0 %v86
    %888 = vmatprep.subr.mxu0 0.0
    %889 = vmatpush1.msra.mxu0 %v87
    %890 = vmatprep.subr.mxu0 0.0
    %891 = vmatpush1.msra.mxu0 %v88
    %892 = vmatprep.subr.mxu0 0.0
    %893 = vmatpush1.msra.mxu0 %v89
    %894 = vmatprep.subr.mxu0 0.0
    %895 = vmatpush1.msra.mxu0 0.0
    %896 = vmatprep.subr.mxu0 0.0
    %897 = vmatpush1.msra.mxu0 0.0
    %898 = vmatprep.subr.mxu0 0.0
    %899 = vmatpush1.msra.mxu0 0.0
    %900 = vmatprep.subr.mxu0 0.0
    %901 = vmatpush1.msra.mxu0 0.0
    %902 = vmatprep.subr.mxu0 0.0
    %903 = vmatpush1.msra.mxu0 0.0
    %904 = vmatprep.subr.mxu0 0.0
    %905 = vmatpush1.msra.mxu0 0.0
    %906 = vmatprep.subr.mxu0 0.0
    %907 = vmatpush1.msra.mxu0 0.0
    %908 = vmatprep.subr.mxu0 0.0
    %909 = vmatpush1.msra.mxu0 0.0
    %910 = vmatprep.subr.mxu0 0.0
    %911 = vmatpush1.msra.mxu0 0.0
    %912 = vmatprep.subr.mxu0 0.0
    %913 = vmatpush1.msra.mxu0 0.0
    %914 = vmatprep.subr.mxu0 0.0
    %915 = vmatpush1.msra.mxu0 0.0
    %916 = vmatprep.subr.mxu0 0.0
    %917 = vmatpush1.msra.mxu0 0.0
    %918 = vmatprep.subr.mxu0 0.0
    %919 = vmatpush1.msra.mxu0 0.0
    %920 = vmatprep.subr.mxu0 0.0
    %921 = vmatpush1.msra.mxu0 0.0
    %922 = vmatprep.subr.mxu0 0.0
    %923 = vmatpush1.msra.mxu0 0.0
    %924 = vmatprep.subr.mxu0 0.0
    %925 = vmatpush1.msra.mxu0 0.0
    %926 = vmatprep.subr.mxu0 0.0
    %927 = vmatpush1.msra.mxu0 0.0
    %928 = vmatprep.subr.mxu0 0.0
    %929 = vmatpush1.msra.mxu0 0.0
    %930 = vmatprep.subr.mxu0 0.0
    %931 = vmatpush1.msra.mxu0 0.0
    %932 = vmatprep.subr.mxu0 0.0
    %933 = vmatpush1.msra.mxu0 0.0
    %934 = vmatprep.subr.mxu0 0.0
    %935 = vmatpush1.msra.mxu0 0.0
    %936 = vmatprep.subr.mxu0 0.0
    %937 = vmatpush1.msra.mxu0 0.0
    %938 = vmatprep.subr.mxu0 0.0
    %939 = vmatpush1.msra.mxu0 0.0
    %940 = vmatprep.subr.mxu0 0.0
    %941 = vmatpush1.msra.mxu0 0.0
    %942 = vmatprep.mubr.f32.mxu0 0.0
    %943 = vmatmul.mubr.f32.gmra.mrb[0].mxu0 %v876
    %v944 = vpop.f32.mrb[0].mxu0
    %v945 = vadd.f32 %v227, %v944
    %v946 = vpop.f32.mrb[0].mxu0
    %947 = vdwg.mxu0
    %v948 = vxor.u32 %v945, 2147483648
    %v949 = vmul.f32 %v948, 1.442695
    %v950 = vpow.pop %v949
    %v951 = vadd.f32 %v950, 1.0
    %v952 = vrcp.pop %v951
    %v953 = vmul.f32 1.0, %v952
    %v954 = vtanh.pop %v945
    %v955 = vmul.f32 %v953, %v751
    %957 = vrot.lane.b32.xlu0 %v954, 64
    %v958 = vpop.permute.xlu0 %957
    %v960 = vmul.f32 %v953, %v958
    %962 = vrot.lane.b32.xlu0 %v960, 32
    %v963 = vpop.permute.xlu0 %962
    %v965 = vadd.f32 %v955, %v963
    %v966 = vtanh.pop %v965
    %968 = vrot.lane.b32.xlu0 %v966, 64
    %v969 = vpop.permute.xlu0 %968
    %v971 = vmul.f32 %v953, %v969
    %973 = vrot.lane.b32.xlu0 %v971, 32
    %v974 = vpop.permute.xlu0 %973
    %s976 = scalar_lea.vmem [#allocation9], 24
    %977 = vst.msk [vmem:[%s976] sm:$0xff] %vm221, %v974
    %s978 = scalar_lea.vmem [#allocation3], 32
    %v979 = vld [vmem:[%s978] sm:$0xff]
    %980 = vrot.lane.b32.xlu0 %v866, 48
    %v981 = vpop.permute.xlu0 %980
    %v983 = vsel %vm103, %v979, %v981
    %v985 = vsel %vm111, %v983, 0
    %987 = vmatprep.subr.mxu0 0.0
    %988 = vmatpush1.msra.mxu0 %v75
    %989 = vmatprep.subr.mxu0 0.0
    %990 = vmatpush1.msra.mxu0 %v76
    %991 = vmatprep.subr.mxu0 0.0
    %992 = vmatpush1.msra.mxu0 %v77
    %993 = vmatprep.subr.mxu0 0.0
    %994 = vmatpush1.msra.mxu0 %v78
    %995 = vmatprep.subr.mxu0 0.0
    %996 = vmatpush1.msra.mxu0 %v79
    %997 = vmatprep.subr.mxu0 0.0
    %998 = vmatpush1.msra.mxu0 %v80
    %999 = vmatprep.subr.mxu0 0.0
    %1000 = vmatpush1.msra.mxu0 0.0
    %1001 = vmatprep.subr.mxu0 0.0
    %1002 = vmatpush1.msra.mxu0 0.0
    %1003 = vmatprep.subr.mxu0 0.0
    %1004 = vmatpush1.msra.mxu0 0.0
    %1005 = vmatprep.subr.mxu0 0.0
    %1006 = vmatpush1.msra.mxu0 0.0
    %1007 = vmatprep.subr.mxu0 0.0
    %1008 = vmatpush1.msra.mxu0 0.0
    %1009 = vmatprep.subr.mxu0 0.0
    %1010 = vmatpush1.msra.mxu0 0.0
    %1011 = vmatprep.subr.mxu0 0.0
    %1012 = vmatpush1.msra.mxu0 0.0
    %1013 = vmatprep.subr.mxu0 0.0
    %1014 = vmatpush1.msra.mxu0 0.0
    %1015 = vmatprep.subr.mxu0 0.0
    %1016 = vmatpush1.msra.mxu0 0.0
    %1017 = vmatprep.subr.mxu0 0.0
    %1018 = vmatpush1.msra.mxu0 0.0
    %1019 = vmatprep.subr.mxu0 0.0
    %1020 = vmatpush1.msra.mxu0 0.0
    %1021 = vmatprep.subr.mxu0 0.0
    %1022 = vmatpush1.msra.mxu0 0.0
    %1023 = vmatprep.subr.mxu0 0.0
    %1024 = vmatpush1.msra.mxu0 0.0
    %1025 = vmatprep.subr.mxu0 0.0
    %1026 = vmatpush1.msra.mxu0 0.0
    %1027 = vmatprep.subr.mxu0 0.0
    %1028 = vmatpush1.msra.mxu0 0.0
    %1029 = vmatprep.subr.mxu0 0.0
    %1030 = vmatpush1.msra.mxu0 0.0
    %1031 = vmatprep.subr.mxu0 0.0
    %1032 = vmatpush1.msra.mxu0 0.0
    %1033 = vmatprep.subr.mxu0 0.0
    %1034 = vmatpush1.msra.mxu0 0.0
    %1035 = vmatprep.subr.mxu0 0.0
    %1036 = vmatpush1.msra.mxu0 0.0
    %1037 = vmatprep.subr.mxu0 0.0
    %1038 = vmatpush1.msra.mxu0 0.0
    %1039 = vmatprep.subr.mxu0 0.0
    %1040 = vmatpush1.msra.mxu0 0.0
    %1041 = vmatprep.subr.mxu0 0.0
    %1042 = vmatpush1.msra.mxu0 0.0
    %1043 = vmatprep.subr.mxu0 0.0
    %1044 = vmatpush1.msra.mxu0 0.0
    %1045 = vmatprep.subr.mxu0 0.0
    %1046 = vmatpush1.msra.mxu0 0.0
    %1047 = vmatprep.subr.mxu0 0.0
    %1048 = vmatpush1.msra.mxu0 0.0
    %1049 = vmatprep.subr.mxu0 0.0
    %1050 = vmatpush1.msra.mxu0 0.0
    %1051 = vmatprep.mubr.f32.mxu0 0.0
    %1052 = vmatmul.mubr.f32.gmra.mrb[0].mxu0 %v985
    %v1053 = vpop.f32.mrb[0].mxu0
    %v1054 = vadd.f32 %v109, %v1053
    %v1055 = vpop.f32.mrb[0].mxu0
    %1056 = vdwg.mxu0
    %v1057 = vxor.u32 %v1054, 2147483648
    %v1058 = vmul.f32 %v1057, 1.442695
    %v1059 = vpow.pop %v1058
    %v1060 = vadd.f32 %v1059, 1.0
    %v1061 = vrcp.pop %v1060
    %v1062 = vmul.f32 1.0, %v1061
    %v1063 = vtanh.pop %v1054
    %v1064 = vmul.f32 %v1062, %v860
    %1066 = vrot.lane.b32.xlu0 %v1063, 64
    %v1067 = vpop.permute.xlu0 %1066
    %v1069 = vmul.f32 %v1062, %v1067
    %1071 = vrot.lane.b32.xlu0 %v1069, 32
    %v1072 = vpop.permute.xlu0 %1071
    %v1074 = vadd.f32 %v1064, %v1072
    %v1075 = vtanh.pop %v1074
    %1077 = vrot.lane.b32.xlu0 %v1075, 64
    %v1078 = vpop.permute.xlu0 %1077
    %v1080 = vmul.f32 %v1062, %v1078
    %1082 = vrot.lane.b32.xlu0 %v1080, 32
    %v1083 = vpop.permute.xlu0 %1082
    %1085 = vrot.lane.b32.xlu0 %v971, 64
    %v1086 = vpop.permute.xlu0 %1085
    %v1088 = vsel %vm221, %v1083, %v1086
    %v1090 = vsel %vm229, %v1088, 0
    %1092 = vmatprep.subr.mxu0 0.0
    %1093 = vmatpush1.msra.mxu0 %v82
    %1094 = vmatprep.subr.mxu0 0.0
    %1095 = vmatpush1.msra.mxu0 %v83
    %1096 = vmatprep.subr.mxu0 0.0
    %1097 = vmatpush1.msra.mxu0 %v84
    %1098 = vmatprep.subr.mxu0 0.0
    %1099 = vmatpush1.msra.mxu0 %v85
    %1100 = vmatprep.subr.mxu0 0.0
    %1101 = vmatpush1.msra.mxu0 %v86
    %1102 = vmatprep.subr.mxu0 0.0
    %1103 = vmatpush1.msra.mxu0 %v87
    %1104 = vmatprep.subr.mxu0 0.0
    %1105 = vmatpush1.msra.mxu0 %v88
    %1106 = vmatprep.subr.mxu0 0.0
    %1107 = vmatpush1.msra.mxu0 %v89
    %1108 = vmatprep.subr.mxu0 0.0
    %1109 = vmatpush1.msra.mxu0 0.0
    %1110 = vmatprep.subr.mxu0 0.0
    %1111 = vmatpush1.msra.mxu0 0.0
    %1112 = vmatprep.subr.mxu0 0.0
    %1113 = vmatpush1.msra.mxu0 0.0
    %1114 = vmatprep.subr.mxu0 0.0
    %1115 = vmatpush1.msra.mxu0 0.0
    %1116 = vmatprep.subr.mxu0 0.0
    %1117 = vmatpush1.msra.mxu0 0.0
    %1118 = vmatprep.subr.mxu0 0.0
    %1119 = vmatpush1.msra.mxu0 0.0
    %1120 = vmatprep.subr.mxu0 0.0
    %1121 = vmatpush1.msra.mxu0 0.0
    %1122 = vmatprep.subr.mxu0 0.0
    %1123 = vmatpush1.msra.mxu0 0.0
    %1124 = vmatprep.subr.mxu0 0.0
    %1125 = vmatpush1.msra.mxu0 0.0
    %1126 = vmatprep.subr.mxu0 0.0
    %1127 = vmatpush1.msra.mxu0 0.0
    %1128 = vmatprep.subr.mxu0 0.0
    %1129 = vmatpush1.msra.mxu0 0.0
    %1130 = vmatprep.subr.mxu0 0.0
    %1131 = vmatpush1.msra.mxu0 0.0
    %1132 = vmatprep.subr.mxu0 0.0
    %1133 = vmatpush1.msra.mxu0 0.0
    %1134 = vmatprep.subr.mxu0 0.0
    %1135 = vmatpush1.msra.mxu0 0.0
    %1136 = vmatprep.subr.mxu0 0.0
    %1137 = vmatpush1.msra.mxu0 0.0
    %1138 = vmatprep.subr.mxu0 0.0
    %1139 = vmatpush1.msra.mxu0 0.0
    %1140 = vmatprep.subr.mxu0 0.0
    %1141 = vmatpush1.msra.mxu0 0.0
    %1142 = vmatprep.subr.mxu0 0.0
    %1143 = vmatpush1.msra.mxu0 0.0
    %1144 = vmatprep.subr.mxu0 0.0
    %1145 = vmatpush1.msra.mxu0 0.0
    %1146 = vmatprep.subr.mxu0 0.0
    %1147 = vmatpush1.msra.mxu0 0.0
    %1148 = vmatprep.subr.mxu0 0.0
    %1149 = vmatpush1.msra.mxu0 0.0
    %1150 = vmatprep.subr.mxu0 0.0
    %1151 = vmatpush1.msra.mxu0 0.0
    %1152 = vmatprep.subr.mxu0 0.0
    %1153 = vmatpush1.msra.mxu0 0.0
    %1154 = vmatprep.subr.mxu0 0.0
    %1155 = vmatpush1.msra.mxu0 0.0
    %1156 = vmatprep.mubr.f32.mxu0 0.0
    %1157 = vmatmul.mubr.f32.gmra.mrb[0].mxu0 %v1090
    %v1158 = vpop.f32.mrb[0].mxu0
    %v1159 = vadd.f32 %v227, %v1158
    %v1160 = vpop.f32.mrb[0].mxu0
    %1161 = vdwg.mxu0
    %v1162 = vxor.u32 %v1159, 2147483648
    %v1163 = vmul.f32 %v1162, 1.442695
    %v1164 = vpow.pop %v1163
    %v1165 = vadd.f32 %v1164, 1.0
    %v1166 = vrcp.pop %v1165
    %v1167 = vmul.f32 1.0, %v1166
    %v1168 = vtanh.pop %v1159
    %v1169 = vmul.f32 %v1167, %v965
    %1171 = vrot.lane.b32.xlu0 %v1168, 64
    %v1172 = vpop.permute.xlu0 %1171
    %v1174 = vmul.f32 %v1167, %v1172
    %1176 = vrot.lane.b32.xlu0 %v1174, 32
    %v1177 = vpop.permute.xlu0 %1176
    %v1179 = vadd.f32 %v1169, %v1177
    %v1180 = vtanh.pop %v1179
    %1182 = vrot.lane.b32.xlu0 %v1180, 64
    %v1183 = vpop.permute.xlu0 %1182
    %v1185 = vmul.f32 %v1167, %v1183
    %1187 = vrot.lane.b32.xlu0 %v1185, 32
    %v1188 = vpop.permute.xlu0 %1187
    %s1190 = scalar_lea.vmem [#allocation9], 32
    %1191 = vst.msk [vmem:[%s1190] sm:$0xff] %vm221, %v1188
    %s1192 = scalar_lea.vmem [#allocation3], 40
    %v1193 = vld [vmem:[%s1192] sm:$0xff]
    %1194 = vrot.lane.b32.xlu0 %v1080, 48
    %v1195 = vpop.permute.xlu0 %1194
    %v1197 = vsel %vm103, %v1193, %v1195
    %v1199 = vsel %vm111, %v1197, 0
    %1201 = vmatprep.subr.mxu0 0.0
    %1202 = vmatpush1.msra.mxu0 %v75
    %1203 = vmatprep.subr.mxu0 0.0
    %1204 = vmatpush1.msra.mxu0 %v76
    %1205 = vmatprep.subr.mxu0 0.0
    %1206 = vmatpush1.msra.mxu0 %v77
    %1207 = vmatprep.subr.mxu0 0.0
    %1208 = vmatpush1.msra.mxu0 %v78
    %1209 = vmatprep.subr.mxu0 0.0
    %1210 = vmatpush1.msra.mxu0 %v79
    %1211 = vmatprep.subr.mxu0 0.0
    %1212 = vmatpush1.msra.mxu0 %v80
    %1213 = vmatprep.subr.mxu0 0.0
    %1214 = vmatpush1.msra.mxu0 0.0
    %1215 = vmatprep.subr.mxu0 0.0
    %1216 = vmatpush1.msra.mxu0 0.0
    %1217 = vmatprep.subr.mxu0 0.0
    %1218 = vmatpush1.msra.mxu0 0.0
    %1219 = vmatprep.subr.mxu0 0.0
    %1220 = vmatpush1.msra.mxu0 0.0
    %1221 = vmatprep.subr.mxu0 0.0
    %1222 = vmatpush1.msra.mxu0 0.0
    %1223 = vmatprep.subr.mxu0 0.0
    %1224 = vmatpush1.msra.mxu0 0.0
    %1225 = vmatprep.subr.mxu0 0.0
    %1226 = vmatpush1.msra.mxu0 0.0
    %1227 = vmatprep.subr.mxu0 0.0
    %1228 = vmatpush1.msra.mxu0 0.0
    %1229 = vmatprep.subr.mxu0 0.0
    %1230 = vmatpush1.msra.mxu0 0.0
    %1231 = vmatprep.subr.mxu0 0.0
    %1232 = vmatpush1.msra.mxu0 0.0
    %1233 = vmatprep.subr.mxu0 0.0
    %1234 = vmatpush1.msra.mxu0 0.0
    %1235 = vmatprep.subr.mxu0 0.0
    %1236 = vmatpush1.msra.mxu0 0.0
    %1237 = vmatprep.subr.mxu0 0.0
    %1238 = vmatpush1.msra.mxu0 0.0
    %1239 = vmatprep.subr.mxu0 0.0
    %1240 = vmatpush1.msra.mxu0 0.0
    %1241 = vmatprep.subr.mxu0 0.0
    %1242 = vmatpush1.msra.mxu0 0.0
    %1243 = vmatprep.subr.mxu0 0.0
    %1244 = vmatpush1.msra.mxu0 0.0
    %1245 = vmatprep.subr.mxu0 0.0
    %1246 = vmatpush1.msra.mxu0 0.0
    %1247 = vmatprep.subr.mxu0 0.0
    %1248 = vmatpush1.msra.mxu0 0.0
    %1249 = vmatprep.subr.mxu0 0.0
    %1250 = vmatpush1.msra.mxu0 0.0
    %1251 = vmatprep.subr.mxu0 0.0
    %1252 = vmatpush1.msra.mxu0 0.0
    %1253 = vmatprep.subr.mxu0 0.0
    %1254 = vmatpush1.msra.mxu0 0.0
    %1255 = vmatprep.subr.mxu0 0.0
    %1256 = vmatpush1.msra.mxu0 0.0
    %1257 = vmatprep.subr.mxu0 0.0
    %1258 = vmatpush1.msra.mxu0 0.0
    %1259 = vmatprep.subr.mxu0 0.0
    %1260 = vmatpush1.msra.mxu0 0.0
    %1261 = vmatprep.subr.mxu0 0.0
    %1262 = vmatpush1.msra.mxu0 0.0
    %1263 = vmatprep.subr.mxu0 0.0
    %1264 = vmatpush1.msra.mxu0 0.0
    %1265 = vmatprep.mubr.f32.mxu0 0.0
    %1266 = vmatmul.mubr.f32.gmra.mrb[0].mxu0 %v1199
    %v1267 = vpop.f32.mrb[0].mxu0
    %v1268 = vadd.f32 %v109, %v1267
    %v1269 = vpop.f32.mrb[0].mxu0
    %1270 = vdwg.mxu0
    %v1271 = vxor.u32 %v1268, 2147483648
    %v1272 = vmul.f32 %v1271, 1.442695
    %v1273 = vpow.pop %v1272
    %v1274 = vadd.f32 %v1273, 1.0
    %v1275 = vrcp.pop %v1274
    %v1276 = vmul.f32 1.0, %v1275
    %v1277 = vtanh.pop %v1268
    %v1278 = vmul.f32 %v1276, %v1074
    %1280 = vrot.lane.b32.xlu0 %v1277, 64
    %v1281 = vpop.permute.xlu0 %1280
    %v1283 = vmul.f32 %v1276, %v1281
    %1285 = vrot.lane.b32.xlu0 %v1283, 32
    %v1286 = vpop.permute.xlu0 %1285
    %v1288 = vadd.f32 %v1278, %v1286
    %v1289 = vtanh.pop %v1288
    %1291 = vrot.lane.b32.xlu0 %v1289, 64
    %v1292 = vpop.permute.xlu0 %1291
    %v1294 = vmul.f32 %v1276, %v1292
    %1296 = vrot.lane.b32.xlu0 %v1294, 32
    %v1297 = vpop.permute.xlu0 %1296
    %1299 = vrot.lane.b32.xlu0 %v1185, 64
    %v1300 = vpop.permute.xlu0 %1299
    %v1302 = vsel %vm221, %v1297, %v1300
    %v1304 = vsel %vm229, %v1302, 0
    %1306 = vmatprep.subr.mxu0 0.0
    %1307 = vmatpush1.msra.mxu0 %v82
    %1308 = vmatprep.subr.mxu0 0.0
    %1309 = vmatpush1.msra.mxu0 %v83
    %1310 = vmatprep.subr.mxu0 0.0
    %1311 = vmatpush1.msra.mxu0 %v84
    %1312 = vmatprep.subr.mxu0 0.0
    %1313 = vmatpush1.msra.mxu0 %v85
    %1314 = vmatprep.subr.mxu0 0.0
    %1315 = vmatpush1.msra.mxu0 %v86
    %1316 = vmatprep.subr.mxu0 0.0
    %1317 = vmatpush1.msra.mxu0 %v87
    %1318 = vmatprep.subr.mxu0 0.0
    %1319 = vmatpush1.msra.mxu0 %v88
    %1320 = vmatprep.subr.mxu0 0.0
    %1321 = vmatpush1.msra.mxu0 %v89
    %1322 = vmatprep.subr.mxu0 0.0
    %1323 = vmatpush1.msra.mxu0 0.0
    %1324 = vmatprep.subr.mxu0 0.0
    %1325 = vmatpush1.msra.mxu0 0.0
    %1326 = vmatprep.subr.mxu0 0.0
    %1327 = vmatpush1.msra.mxu0 0.0
    %1328 = vmatprep.subr.mxu0 0.0
    %1329 = vmatpush1.msra.mxu0 0.0
    %1330 = vmatprep.subr.mxu0 0.0
    %1331 = vmatpush1.msra.mxu0 0.0
    %1332 = vmatprep.subr.mxu0 0.0
    %1333 = vmatpush1.msra.mxu0 0.0
    %1334 = vmatprep.subr.mxu0 0.0
    %1335 = vmatpush1.msra.mxu0 0.0
    %1336 = vmatprep.subr.mxu0 0.0
    %1337 = vmatpush1.msra.mxu0 0.0
    %1338 = vmatprep.subr.mxu0 0.0
    %1339 = vmatpush1.msra.mxu0 0.0
    %1340 = vmatprep.subr.mxu0 0.0
    %1341 = vmatpush1.msra.mxu0 0.0
    %1342 = vmatprep.subr.mxu0 0.0
    %1343 = vmatpush1.msra.mxu0 0.0
    %1344 = vmatprep.subr.mxu0 0.0
    %1345 = vmatpush1.msra.mxu0 0.0
    %1346 = vmatprep.subr.mxu0 0.0
    %1347 = vmatpush1.msra.mxu0 0.0
    %1348 = vmatprep.subr.mxu0 0.0
    %1349 = vmatpush1.msra.mxu0 0.0
    %1350 = vmatprep.subr.mxu0 0.0
    %1351 = vmatpush1.msra.mxu0 0.0
    %1352 = vmatprep.subr.mxu0 0.0
    %1353 = vmatpush1.msra.mxu0 0.0
    %1354 = vmatprep.subr.mxu0 0.0
    %1355 = vmatpush1.msra.mxu0 0.0
    %1356 = vmatprep.subr.mxu0 0.0
    %1357 = vmatpush1.msra.mxu0 0.0
    %1358 = vmatprep.subr.mxu0 0.0
    %1359 = vmatpush1.msra.mxu0 0.0
    %1360 = vmatprep.subr.mxu0 0.0
    %1361 = vmatpush1.msra.mxu0 0.0
    %1362 = vmatprep.subr.mxu0 0.0
    %1363 = vmatpush1.msra.mxu0 0.0
    %1364 = vmatprep.subr.mxu0 0.0
    %1365 = vmatpush1.msra.mxu0 0.0
    %1366 = vmatprep.subr.mxu0 0.0
    %1367 = vmatpush1.msra.mxu0 0.0
    %1368 = vmatprep.subr.mxu0 0.0
    %1369 = vmatpush1.msra.mxu0 0.0
    %1370 = vmatprep.mubr.f32.mxu0 0.0
    %1371 = vmatmul.mubr.f32.gmra.mrb[0].mxu0 %v1304
    %v1372 = vpop.f32.mrb[0].mxu0
    %v1373 = vadd.f32 %v227, %v1372
    %v1374 = vpop.f32.mrb[0].mxu0
    %1375 = vdwg.mxu0
    %v1376 = vxor.u32 %v1373, 2147483648
    %v1377 = vmul.f32 %v1376, 1.442695
    %v1378 = vpow.pop %v1377
    %v1379 = vadd.f32 %v1378, 1.0
    %v1380 = vrcp.pop %v1379
    %v1381 = vmul.f32 1.0, %v1380
    %v1382 = vtanh.pop %v1373
    %v1383 = vmul.f32 %v1381, %v1179
    %1385 = vrot.lane.b32.xlu0 %v1382, 64
    %v1386 = vpop.permute.xlu0 %1385
    %v1388 = vmul.f32 %v1381, %v1386
    %1390 = vrot.lane.b32.xlu0 %v1388, 32
    %v1391 = vpop.permute.xlu0 %1390
    %v1393 = vadd.f32 %v1383, %v1391
    %v1394 = vtanh.pop %v1393
    %1396 = vrot.lane.b32.xlu0 %v1394, 64
    %v1397 = vpop.permute.xlu0 %1396
    %v1399 = vmul.f32 %v1381, %v1397
    %1401 = vrot.lane.b32.xlu0 %v1399, 32
    %v1402 = vpop.permute.xlu0 %1401
    %s1404 = scalar_lea.vmem [#allocation9], 40
    %1405 = vst.msk [vmem:[%s1404] sm:$0xff] %vm221, %v1402
    %s1406 = scalar_lea.vmem [#allocation3], 48
    %v1407 = vld [vmem:[%s1406] sm:$0xff]
    %1408 = vrot.lane.b32.xlu0 %v1294, 48
    %v1409 = vpop.permute.xlu0 %1408
    %v1411 = vsel %vm103, %v1407, %v1409
    %v1413 = vsel %vm111, %v1411, 0
    %1415 = vmatprep.subr.mxu0 0.0
    %1416 = vmatpush1.msra.mxu0 %v75
    %1417 = vmatprep.subr.mxu0 0.0
    %1418 = vmatpush1.msra.mxu0 %v76
    %1419 = vmatprep.subr.mxu0 0.0
    %1420 = vmatpush1.msra.mxu0 %v77
    %1421 = vmatprep.subr.mxu0 0.0
    %1422 = vmatpush1.msra.mxu0 %v78
    %1423 = vmatprep.subr.mxu0 0.0
    %1424 = vmatpush1.msra.mxu0 %v79
    %1425 = vmatprep.subr.mxu0 0.0
    %1426 = vmatpush1.msra.mxu0 %v80
    %1427 = vmatprep.subr.mxu0 0.0
    %1428 = vmatpush1.msra.mxu0 0.0
    %1429 = vmatprep.subr.mxu0 0.0
    %1430 = vmatpush1.msra.mxu0 0.0
    %1431 = vmatprep.subr.mxu0 0.0
    %1432 = vmatpush1.msra.mxu0 0.0
    %1433 = vmatprep.subr.mxu0 0.0
    %1434 = vmatpush1.msra.mxu0 0.0
    %1435 = vmatprep.subr.mxu0 0.0
    %1436 = vmatpush1.msra.mxu0 0.0
    %1437 = vmatprep.subr.mxu0 0.0
    %1438 = vmatpush1.msra.mxu0 0.0
    %1439 = vmatprep.subr.mxu0 0.0
    %1440 = vmatpush1.msra.mxu0 0.0
    %1441 = vmatprep.subr.mxu0 0.0
    %1442 = vmatpush1.msra.mxu0 0.0
    %1443 = vmatprep.subr.mxu0 0.0
    %1444 = vmatpush1.msra.mxu0 0.0
    %1445 = vmatprep.subr.mxu0 0.0
    %1446 = vmatpush1.msra.mxu0 0.0
    %1447 = vmatprep.subr.mxu0 0.0
    %1448 = vmatpush1.msra.mxu0 0.0
    %1449 = vmatprep.subr.mxu0 0.0
    %1450 = vmatpush1.msra.mxu0 0.0
    %1451 = vmatprep.subr.mxu0 0.0
    %1452 = vmatpush1.msra.mxu0 0.0
    %1453 = vmatprep.subr.mxu0 0.0
    %1454 = vmatpush1.msra.mxu0 0.0
    %1455 = vmatprep.subr.mxu0 0.0
    %1456 = vmatpush1.msra.mxu0 0.0
    %1457 = vmatprep.subr.mxu0 0.0
    %1458 = vmatpush1.msra.mxu0 0.0
    %1459 = vmatprep.subr.mxu0 0.0
    %1460 = vmatpush1.msra.mxu0 0.0
    %1461 = vmatprep.subr.mxu0 0.0
    %1462 = vmatpush1.msra.mxu0 0.0
    %1463 = vmatprep.subr.mxu0 0.0
    %1464 = vmatpush1.msra.mxu0 0.0
    %1465 = vmatprep.subr.mxu0 0.0
    %1466 = vmatpush1.msra.mxu0 0.0
    %1467 = vmatprep.subr.mxu0 0.0
    %1468 = vmatpush1.msra.mxu0 0.0
    %1469 = vmatprep.subr.mxu0 0.0
    %1470 = vmatpush1.msra.mxu0 0.0
    %1471 = vmatprep.subr.mxu0 0.0
    %1472 = vmatpush1.msra.mxu0 0.0
    %1473 = vmatprep.subr.mxu0 0.0
    %1474 = vmatpush1.msra.mxu0 0.0
    %1475 = vmatprep.subr.mxu0 0.0
    %1476 = vmatpush1.msra.mxu0 0.0
    %1477 = vmatprep.subr.mxu0 0.0
    %1478 = vmatpush1.msra.mxu0 0.0
    %1479 = vmatprep.mubr.f32.mxu0 0.0
    %1480 = vmatmul.mubr.f32.gmra.mrb[0].mxu0 %v1413
    %v1481 = vpop.f32.mrb[0].mxu0
    %v1482 = vadd.f32 %v109, %v1481
    %v1483 = vpop.f32.mrb[0].mxu0
    %1484 = vdwg.mxu0
    %v1485 = vxor.u32 %v1482, 2147483648
    %v1486 = vmul.f32 %v1485, 1.442695
    %v1487 = vpow.pop %v1486
    %v1488 = vadd.f32 %v1487, 1.0
    %v1489 = vrcp.pop %v1488
    %v1490 = vmul.f32 1.0, %v1489
    %v1491 = vtanh.pop %v1482
    %v1492 = vmul.f32 %v1490, %v1288
    %1494 = vrot.lane.b32.xlu0 %v1491, 64
    %v1495 = vpop.permute.xlu0 %1494
    %v1497 = vmul.f32 %v1490, %v1495
    %1499 = vrot.lane.b32.xlu0 %v1497, 32
    %v1500 = vpop.permute.xlu0 %1499
    %v1502 = vadd.f32 %v1492, %v1500
    %v1503 = vtanh.pop %v1502
    %1505 = vrot.lane.b32.xlu0 %v1503, 64
    %v1506 = vpop.permute.xlu0 %1505
    %v1508 = vmul.f32 %v1490, %v1506
    %1510 = vrot.lane.b32.xlu0 %v1508, 32
    %v1511 = vpop.permute.xlu0 %1510
    %1513 = vrot.lane.b32.xlu0 %v1399, 64
    %v1514 = vpop.permute.xlu0 %1513
    %v1516 = vsel %vm221, %v1511, %v1514
    %v1518 = vsel %vm229, %v1516, 0
    %1520 = vmatprep.subr.mxu0 0.0
    %1521 = vmatpush1.msra.mxu0 %v82
    %1522 = vmatprep.subr.mxu0 0.0
    %1523 = vmatpush1.msra.mxu0 %v83
    %1524 = vmatprep.subr.mxu0 0.0
    %1525 = vmatpush1.msra.mxu0 %v84
    %1526 = vmatprep.subr.mxu0 0.0
    %1527 = vmatpush1.msra.mxu0 %v85
    %1528 = vmatprep.subr.mxu0 0.0
    %1529 = vmatpush1.msra.mxu0 %v86
    %1530 = vmatprep.subr.mxu0 0.0
    %1531 = vmatpush1.msra.mxu0 %v87
    %1532 = vmatprep.subr.mxu0 0.0
    %1533 = vmatpush1.msra.mxu0 %v88
    %1534 = vmatprep.subr.mxu0 0.0
    %1535 = vmatpush1.msra.mxu0 %v89
    %1536 = vmatprep.subr.mxu0 0.0
    %1537 = vmatpush1.msra.mxu0 0.0
    %1538 = vmatprep.subr.mxu0 0.0
    %1539 = vmatpush1.msra.mxu0 0.0
    %1540 = vmatprep.subr.mxu0 0.0
    %1541 = vmatpush1.msra.mxu0 0.0
    %1542 = vmatprep.subr.mxu0 0.0
    %1543 = vmatpush1.msra.mxu0 0.0
    %1544 = vmatprep.subr.mxu0 0.0
    %1545 = vmatpush1.msra.mxu0 0.0
    %1546 = vmatprep.subr.mxu0 0.0
    %1547 = vmatpush1.msra.mxu0 0.0
    %1548 = vmatprep.subr.mxu0 0.0
    %1549 = vmatpush1.msra.mxu0 0.0
    %1550 = vmatprep.subr.mxu0 0.0
    %1551 = vmatpush1.msra.mxu0 0.0
    %1552 = vmatprep.subr.mxu0 0.0
    %1553 = vmatpush1.msra.mxu0 0.0
    %1554 = vmatprep.subr.mxu0 0.0
    %1555 = vmatpush1.msra.mxu0 0.0
    %1556 = vmatprep.subr.mxu0 0.0
    %1557 = vmatpush1.msra.mxu0 0.0
    %1558 = vmatprep.subr.mxu0 0.0
    %1559 = vmatpush1.msra.mxu0 0.0
    %1560 = vmatprep.subr.mxu0 0.0
    %1561 = vmatpush1.msra.mxu0 0.0
    %1562 = vmatprep.subr.mxu0 0.0
    %1563 = vmatpush1.msra.mxu0 0.0
    %1564 = vmatprep.subr.mxu0 0.0
    %1565 = vmatpush1.msra.mxu0 0.0
    %1566 = vmatprep.subr.mxu0 0.0
    %1567 = vmatpush1.msra.mxu0 0.0
    %1568 = vmatprep.subr.mxu0 0.0
    %1569 = vmatpush1.msra.mxu0 0.0
    %1570 = vmatprep.subr.mxu0 0.0
    %1571 = vmatpush1.msra.mxu0 0.0
    %1572 = vmatprep.subr.mxu0 0.0
    %1573 = vmatpush1.msra.mxu0 0.0
    %1574 = vmatprep.subr.mxu0 0.0
    %1575 = vmatpush1.msra.mxu0 0.0
    %1576 = vmatprep.subr.mxu0 0.0
    %1577 = vmatpush1.msra.mxu0 0.0
    %1578 = vmatprep.subr.mxu0 0.0
    %1579 = vmatpush1.msra.mxu0 0.0
    %1580 = vmatprep.subr.mxu0 0.0
    %1581 = vmatpush1.msra.mxu0 0.0
    %1582 = vmatprep.subr.mxu0 0.0
    %1583 = vmatpush1.msra.mxu0 0.0
    %1584 = vmatprep.mubr.f32.mxu0 0.0
    %1585 = vmatmul.mubr.f32.gmra.mrb[0].mxu0 %v1518
    %v1586 = vpop.f32.mrb[0].mxu0
    %v1587 = vadd.f32 %v227, %v1586
    %v1588 = vpop.f32.mrb[0].mxu0
    %1589 = vdwg.mxu0
    %v1590 = vxor.u32 %v1587, 2147483648
    %v1591 = vmul.f32 %v1590, 1.442695
    %v1592 = vpow.pop %v1591
    %v1593 = vadd.f32 %v1592, 1.0
    %v1594 = vrcp.pop %v1593
    %v1595 = vmul.f32 1.0, %v1594
    %v1596 = vtanh.pop %v1587
    %v1597 = vmul.f32 %v1595, %v1393
    %1599 = vrot.lane.b32.xlu0 %v1596, 64
    %v1600 = vpop.permute.xlu0 %1599
    %v1602 = vmul.f32 %v1595, %v1600
    %1604 = vrot.lane.b32.xlu0 %v1602, 32
    %v1605 = vpop.permute.xlu0 %1604
    %v1607 = vadd.f32 %v1597, %v1605
    %v1608 = vtanh.pop %v1607
    %1610 = vrot.lane.b32.xlu0 %v1608, 64
    %v1611 = vpop.permute.xlu0 %1610
    %v1613 = vmul.f32 %v1595, %v1611
    %1615 = vrot.lane.b32.xlu0 %v1613, 32
    %v1616 = vpop.permute.xlu0 %1615
    %s1618 = scalar_lea.vmem [#allocation9], 48
    %1619 = vst.msk [vmem:[%s1618] sm:$0xff] %vm221, %v1616
    %s1620 = scalar_lea.vmem [#allocation3], 56
    %v1621 = vld [vmem:[%s1620] sm:$0xff]
    %1622 = vrot.lane.b32.xlu0 %v1508, 48
    %v1623 = vpop.permute.xlu0 %1622
    %v1625 = vsel %vm103, %v1621, %v1623
    %v1627 = vsel %vm111, %v1625, 0
    %1629 = vmatprep.subr.mxu0 0.0
    %1630 = vmatpush1.msra.mxu0 %v75
    %1631 = vmatprep.subr.mxu0 0.0
    %1632 = vmatpush1.msra.mxu0 %v76
    %1633 = vmatprep.subr.mxu0 0.0
    %1634 = vmatpush1.msra.mxu0 %v77
    %1635 = vmatprep.subr.mxu0 0.0
    %1636 = vmatpush1.msra.mxu0 %v78
    %1637 = vmatprep.subr.mxu0 0.0
    %1638 = vmatpush1.msra.mxu0 %v79
    %1639 = vmatprep.subr.mxu0 0.0
    %1640 = vmatpush1.msra.mxu0 %v80
    %1641 = vmatprep.subr.mxu0 0.0
    %1642 = vmatpush1.msra.mxu0 0.0
    %1643 = vmatprep.subr.mxu0 0.0
    %1644 = vmatpush1.msra.mxu0 0.0
    %1645 = vmatprep.subr.mxu0 0.0
    %1646 = vmatpush1.msra.mxu0 0.0
    %1647 = vmatprep.subr.mxu0 0.0
    %1648 = vmatpush1.msra.mxu0 0.0
    %1649 = vmatprep.subr.mxu0 0.0
    %1650 = vmatpush1.msra.mxu0 0.0
    %1651 = vmatprep.subr.mxu0 0.0
    %1652 = vmatpush1.msra.mxu0 0.0
    %1653 = vmatprep.subr.mxu0 0.0
    %1654 = vmatpush1.msra.mxu0 0.0
    %1655 = vmatprep.subr.mxu0 0.0
    %1656 = vmatpush1.msra.mxu0 0.0
    %1657 = vmatprep.subr.mxu0 0.0
    %1658 = vmatpush1.msra.mxu0 0.0
    %1659 = vmatprep.subr.mxu0 0.0
    %1660 = vmatpush1.msra.mxu0 0.0
    %1661 = vmatprep.subr.mxu0 0.0
    %1662 = vmatpush1.msra.mxu0 0.0
    %1663 = vmatprep.subr.mxu0 0.0
    %1664 = vmatpush1.msra.mxu0 0.0
    %1665 = vmatprep.subr.mxu0 0.0
    %1666 = vmatpush1.msra.mxu0 0.0
    %1667 = vmatprep.subr.mxu0 0.0
    %1668 = vmatpush1.msra.mxu0 0.0
    %1669 = vmatprep.subr.mxu0 0.0
    %1670 = vmatpush1.msra.mxu0 0.0
    %1671 = vmatprep.subr.mxu0 0.0
    %1672 = vmatpush1.msra.mxu0 0.0
    %1673 = vmatprep.subr.mxu0 0.0
    %1674 = vmatpush1.msra.mxu0 0.0
    %1675 = vmatprep.subr.mxu0 0.0
    %1676 = vmatpush1.msra.mxu0 0.0
    %1677 = vmatprep.subr.mxu0 0.0
    %1678 = vmatpush1.msra.mxu0 0.0
    %1679 = vmatprep.subr.mxu0 0.0
    %1680 = vmatpush1.msra.mxu0 0.0
    %1681 = vmatprep.subr.mxu0 0.0
    %1682 = vmatpush1.msra.mxu0 0.0
    %1683 = vmatprep.subr.mxu0 0.0
    %1684 = vmatpush1.msra.mxu0 0.0
    %1685 = vmatprep.subr.mxu0 0.0
    %1686 = vmatpush1.msra.mxu0 0.0
    %1687 = vmatprep.subr.mxu0 0.0
    %1688 = vmatpush1.msra.mxu0 0.0
    %1689 = vmatprep.subr.mxu0 0.0
    %1690 = vmatpush1.msra.mxu0 0.0
    %1691 = vmatprep.subr.mxu0 0.0
    %1692 = vmatpush1.msra.mxu0 0.0
    %1693 = vmatprep.mubr.f32.mxu0 0.0
    %1694 = vmatmul.mubr.f32.gmra.mrb[0].mxu0 %v1627
    %v1695 = vpop.f32.mrb[0].mxu0
    %v1696 = vadd.f32 %v109, %v1695
    %v1697 = vpop.f32.mrb[0].mxu0
    %1698 = vdwg.mxu0
    %v1699 = vxor.u32 %v1696, 2147483648
    %v1700 = vmul.f32 %v1699, 1.442695
    %v1701 = vpow.pop %v1700
    %v1702 = vadd.f32 %v1701, 1.0
    %v1703 = vrcp.pop %v1702
    %v1704 = vmul.f32 1.0, %v1703
    %v1705 = vtanh.pop %v1696
    %v1706 = vmul.f32 %v1704, %v1502
    %1708 = vrot.lane.b32.xlu0 %v1705, 64
    %v1709 = vpop.permute.xlu0 %1708
    %v1711 = vmul.f32 %v1704, %v1709
    %1713 = vrot.lane.b32.xlu0 %v1711, 32
    %v1714 = vpop.permute.xlu0 %1713
    %v1716 = vadd.f32 %v1706, %v1714
    %v1717 = vtanh.pop %v1716
    %1719 = vrot.lane.b32.xlu0 %v1717, 64
    %v1720 = vpop.permute.xlu0 %1719
    %v1722 = vmul.f32 %v1704, %v1720
    %1724 = vrot.lane.b32.xlu0 %v1722, 32
    %v1725 = vpop.permute.xlu0 %1724
    %1727 = vrot.lane.b32.xlu0 %v1613, 64
    %v1728 = vpop.permute.xlu0 %1727
    %v1730 = vsel %vm221, %v1725, %v1728
    %v1732 = vsel %vm229, %v1730, 0
    %1734 = vmatprep.subr.mxu0 0.0
    %1735 = vmatpush1.msra.mxu0 %v82
    %1736 = vmatprep.subr.mxu0 0.0
    %1737 = vmatpush1.msra.mxu0 %v83
    %1738 = vmatprep.subr.mxu0 0.0
    %1739 = vmatpush1.msra.mxu0 %v84
    %1740 = vmatprep.subr.mxu0 0.0
    %1741 = vmatpush1.msra.mxu0 %v85
    %1742 = vmatprep.subr.mxu0 0.0
    %1743 = vmatpush1.msra.mxu0 %v86
    %1744 = vmatprep.subr.mxu0 0.0
    %1745 = vmatpush1.msra.mxu0 %v87
    %1746 = vmatprep.subr.mxu0 0.0
    %1747 = vmatpush1.msra.mxu0 %v88
    %1748 = vmatprep.subr.mxu0 0.0
    %1749 = vmatpush1.msra.mxu0 %v89
    %1750 = vmatprep.subr.mxu0 0.0
    %1751 = vmatpush1.msra.mxu0 0.0
    %1752 = vmatprep.subr.mxu0 0.0
    %1753 = vmatpush1.msra.mxu0 0.0
    %1754 = vmatprep.subr.mxu0 0.0
    %1755 = vmatpush1.msra.mxu0 0.0
    %1756 = vmatprep.subr.mxu0 0.0
    %1757 = vmatpush1.msra.mxu0 0.0
    %1758 = vmatprep.subr.mxu0 0.0
    %1759 = vmatpush1.msra.mxu0 0.0
    %1760 = vmatprep.subr.mxu0 0.0
    %1761 = vmatpush1.msra.mxu0 0.0
    %1762 = vmatprep.subr.mxu0 0.0
    %1763 = vmatpush1.msra.mxu0 0.0
    %1764 = vmatprep.subr.mxu0 0.0
    %1765 = vmatpush1.msra.mxu0 0.0
    %1766 = vmatprep.subr.mxu0 0.0
    %1767 = vmatpush1.msra.mxu0 0.0
    %1768 = vmatprep.subr.mxu0 0.0
    %1769 = vmatpush1.msra.mxu0 0.0
    %1770 = vmatprep.subr.mxu0 0.0
    %1771 = vmatpush1.msra.mxu0 0.0
    %1772 = vmatprep.subr.mxu0 0.0
    %1773 = vmatpush1.msra.mxu0 0.0
    %1774 = vmatprep.subr.mxu0 0.0
    %1775 = vmatpush1.msra.mxu0 0.0
    %1776 = vmatprep.subr.mxu0 0.0
    %1777 = vmatpush1.msra.mxu0 0.0
    %1778 = vmatprep.subr.mxu0 0.0
    %1779 = vmatpush1.msra.mxu0 0.0
    %1780 = vmatprep.subr.mxu0 0.0
    %1781 = vmatpush1.msra.mxu0 0.0
    %1782 = vmatprep.subr.mxu0 0.0
    %1783 = vmatpush1.msra.mxu0 0.0
    %1784 = vmatprep.subr.mxu0 0.0
    %1785 = vmatpush1.msra.mxu0 0.0
    %1786 = vmatprep.subr.mxu0 0.0
    %1787 = vmatpush1.msra.mxu0 0.0
    %1788 = vmatprep.subr.mxu0 0.0
    %1789 = vmatpush1.msra.mxu0 0.0
    %1790 = vmatprep.subr.mxu0 0.0
    %1791 = vmatpush1.msra.mxu0 0.0
    %1792 = vmatprep.subr.mxu0 0.0
    %1793 = vmatpush1.msra.mxu0 0.0
    %1794 = vmatprep.subr.mxu0 0.0
    %1795 = vmatpush1.msra.mxu0 0.0
    %1796 = vmatprep.subr.mxu0 0.0
    %1797 = vmatpush1.msra.mxu0 0.0
    %1798 = vmatprep.mubr.f32.mxu0 0.0
    %1799 = vmatmul.mubr.f32.gmra.mrb[0].mxu0 %v1732
    %v1800 = vpop.f32.mrb[0].mxu0
    %v1801 = vadd.f32 %v227, %v1800
    %v1802 = vpop.f32.mrb[0].mxu0
    %1803 = vdwg.mxu0
    %v1804 = vxor.u32 %v1801, 2147483648
    %v1805 = vmul.f32 %v1804, 1.442695
    %v1806 = vpow.pop %v1805
    %v1807 = vadd.f32 %v1806, 1.0
    %v1808 = vrcp.pop %v1807
    %v1809 = vmul.f32 1.0, %v1808
    %v1810 = vtanh.pop %v1801
    %v1811 = vmul.f32 %v1809, %v1607
    %1813 = vrot.lane.b32.xlu0 %v1810, 64
    %v1814 = vpop.permute.xlu0 %1813
    %v1816 = vmul.f32 %v1809, %v1814
    %1818 = vrot.lane.b32.xlu0 %v1816, 32
    %v1819 = vpop.permute.xlu0 %1818
    %v1821 = vadd.f32 %v1811, %v1819
    %v1822 = vtanh.pop %v1821
    %1824 = vrot.lane.b32.xlu0 %v1822, 64
    %v1825 = vpop.permute.xlu0 %1824
    %v1827 = vmul.f32 %v1809, %v1825
    %1829 = vrot.lane.b32.xlu0 %v1827, 32
    %v1830 = vpop.permute.xlu0 %1829
    %s1832 = scalar_lea.vmem [#allocation9], 56
    %1833 = vst.msk [vmem:[%s1832] sm:$0xff] %vm221, %v1830
    %1834 = vst.msk [vmem:[#allocation2] sm:$0xff] %vm221, %v1725
    %1836 = vrot.lane.b32.xlu0 %v1716, 96
    %v1837 = vpop.permute.xlu0 %1836
    %1839 = vst.msk [vmem:[%s92] sm:$0xff] %vm221, %v1837
    %1840 = vst.msk [vmem:[%s94] sm:$0xff] %vm221, %v1830
    %1842 = vrot.lane.b32.xlu0 %v1821, 96
    %v1843 = vpop.permute.xlu0 %1842
    %1845 = vst.msk [vmem:[%s96] sm:$0xff] %vm221, %v1843
    // Predicated region
    $region38: #{tpu_custom_call.1} parent=1 // pred_check
      %p1846 = pneg %p66
    $region39: #{tpu_custom_call.1} parent=1 // pred_check_branch
      %1848 = sbr.rel (%p1846) target = $region41
    $region40: #{tpu_custom_call.1} parent=1 // pred_region
      %1849 = vst.msk [vmem:[#allocation10] sm:$0xff] %vm221, %v1725
      %s1850 = scalar_lea.vmem [#allocation10], 8
      %1851 = vst.msk [vmem:[%s1850] sm:$0xff] %vm221, %v1830
      %1852 = vst.msk [vmem:[#allocation12] sm:$0xff] %vm221, %v1837
      %s1853 = scalar_lea.vmem [#allocation12], 8
      %1854 = vst.msk [vmem:[%s1853] sm:$0xff] %vm221, %v1843
    $region41: #{tpu_custom_call.1} parent=1 // pred_fallthru
      _
    // Predicated region
    $region42: #{tpu_custom_call.1} parent=1 // pred_check
      _
    $region43: #{tpu_custom_call.1} parent=1 // pred_check_branch
      %1856 = sbr.rel (0) target = $region45
    $region44: #{tpu_custom_call.1} parent=1 // pred_region
      %s1858 = ssub.s32 1024, 1024
      %1859 = vsyncadd [#allocation5], %s1858
      %s1860 = sshll.u32 [#allocation9], 4
      %s1861 = int_to_ptr.vmem [resolvable:$true] %s1860
      %1866 = dma.vmem_to_hbm [thread:$0]  %s1861, 1024, %s5, [#allocation5], 128, 128, 8
    $region45: #{tpu_custom_call.1} parent=1 // pred_fallthru
      _
    // Predicated region
    $region46: #{tpu_custom_call.1} parent=1 // pred_check
      _
    $region47: #{tpu_custom_call.1} parent=1 // pred_check_branch
      %1868 = sbr.rel (0) target = $region49
    $region48: #{tpu_custom_call.1} parent=1 // pred_region
      %s1870 = ssub.s32 256, 256
      %1871 = vsyncadd [#allocation11], %s1870
      %s1872 = sshll.u32 [#allocation10], 4
      %s1873 = int_to_ptr.vmem [resolvable:$true] %s1872
      %1878 = dma.vmem_to_hbm [thread:$0]  %s1873, 256, %s6, [#allocation11], 128, 128, 8
    $region49: #{tpu_custom_call.1} parent=1 // pred_fallthru
      _
    // Predicated region
    $region50: #{tpu_custom_call.1} parent=1 // pred_check
      _
    $region51: #{tpu_custom_call.1} parent=1 // pred_check_branch
      %1880 = sbr.rel (0) target = $region53
    $region52: #{tpu_custom_call.1} parent=1 // pred_region
      %s1882 = ssub.s32 256, 256
      %1883 = vsyncadd [#allocation11], %s1882
      %s1884 = sshll.u32 [#allocation12], 4
      %s1885 = int_to_ptr.vmem [resolvable:$true] %s1884
      %1890 = dma.vmem_to_hbm [thread:$0]  %s1885, 256, %s7, [#allocation11], 128, 128, 8
    $region53: #{tpu_custom_call.1} parent=1 // pred_fallthru
      _
    // Predicated region
    $region54: #{tpu_custom_call.1} parent=1 // pred_check
      _
    $region55: #{tpu_custom_call.1} parent=1 // pred_check_branch
      %1892 = sbr.rel (0) target = $region57
    $region56: #{tpu_custom_call.1} parent=1 // pred_region
      %1893 = dma.done [#allocation5], 1024
    $region57: #{tpu_custom_call.1} parent=1 // pred_fallthru
      _
    // Predicated region
    $region58: #{tpu_custom_call.1} parent=1 // pred_check
      _
    $region59: #{tpu_custom_call.1} parent=1 // pred_check_branch
      %1895 = sbr.rel (0) target = $region61
    $region60: #{tpu_custom_call.1} parent=1 // pred_region
      %1896 = dma.done [#allocation11], 256
    $region61: #{tpu_custom_call.1} parent=1 // pred_fallthru
      _
    // Predicated region
    $region62: #{tpu_custom_call.1} parent=1 // pred_check
      _
    $region63: #{tpu_custom_call.1} parent=1 // pred_check_branch
      %1898 = sbr.rel (0) target = $region65
    $region64: #{tpu_custom_call.1} parent=1 // pred_region
      %1899 = dma.done [#allocation11], 256
    $region65: #{tpu_custom_call.1} parent=1 // pred_fallthru
      _
    %1900 = vsyncpa [#allocation4], 1
    %1901 = vsyncpa [#allocation7], 1
    %1902 = vsyncpa [#allocation5], 1
    %1903 = vsyncpa [#allocation11], 1

</llo_original>
